<compile_context>
chip_gen: v6e
topology: v6e:2x2x1
jax: 0.10.0
libtpu: 0.0.40
codegen_flags: <defaults>
</compile_context>

<pallas_src>
import jax
import jax.numpy as jnp
from jax.experimental import pallas as pl
from jax.experimental.pallas import tpu as pltpu

NEG_SLOPE_GAT = 0.2     # GATConv internal LeakyReLU slope (PyG default)
NEG_SLOPE_ACT = 0.01    # F.leaky_relu_ / nn.LeakyReLU default slope
BN_EPS = 1e-5
NEG_INF = -1e30         # plain Python float -> inlined, not a captured constant


def _leaky(x, slope):
    return jnp.where(x >= 0, x, slope * x)


def _bn(y, gamma, beta):
    # Single-pass batch statistics (training mode, biased variance).
    mean = jnp.mean(y, axis=0, keepdims=True)
    mean_sq = jnp.mean(y * y, axis=0, keepdims=True)
    var = mean_sq - mean * mean
    return (y - mean) * jax.lax.rsqrt(var + BN_EPS) * gamma + beta


def _masked_softmax_attend(a_dst_col, a_src_row, adj_mask, vals_bf16):
    # logits[i, j] = leaky(a_dst[i] + a_src[j]) ; softmax over sources j of node i.
    logits = _leaky(a_dst_col + a_src_row, NEG_SLOPE_GAT)
    masked = jnp.where(adj_mask, logits, NEG_INF)
    m = jnp.max(masked, axis=1, keepdims=True)
    e = jnp.exp(masked - m)                                   # non-edges -> ~0
    attn = e * pl.reciprocal(jnp.sum(e, axis=1, keepdims=True), approx=True)
    return jnp.dot(attn.astype(jnp.bfloat16), vals_bf16,
                   preferred_element_type=jnp.float32)


def fused_kernel(x_ref, adj_ref, idx_ref, msg_ref, bw_ref, fs_ref,
                 logits_ref, sig_ref, h1_scratch):
    m_rows = idx_ref.shape[0]

    adj_mask = adj_ref[...] != 0                              # int8 compare -> vmask

    # ---- packed bf16 weight slab slices ----
    w0     = bw_ref[0:128, :]          # [128,128] conv_0 linear weight
    a0     = bw_ref[128:256, :4]       # [128,4]   w0 @ att_mat0 (folded scores)
    w1a_h0 = bw_ref[256:320, :66]      # [64,66]   rows 0:64 of [w1 | w1 @ att_mat1]
    w1a_h1 = bw_ref[320:384, :66]      # [64,66]   rows 64:128
    mw1h   = bw_ref[384:448, :64]      # [64,64]   mlp.0 weight (h_sel part)
    mw1m   = bw_ref[448:576, :64]      # [128,64]  mlp.0 weight (msg part)
    mw2    = bw_ref[576:640, :32]      # [64,32]
    mw3    = bw_ref[640:672, :]        # [32,128]  lane-padded (cols >=5 are zero)

    # ---- packed f32 bias / BN slab slices ----
    fs = fs_ref[...]
    b0, g0, be0 = fs[0:1, :], fs[1:2, :], fs[2:3, :]
    b1, g1, be1 = fs[3:4, :64], fs[4:5, :64], fs[5:6, :64]
    mb1, mb2, mb3 = fs[6:7, :64], fs[7:8, :32], fs[8:9, :]

    x_bf = x_ref[...].astype(jnp.bfloat16)

    # ---- layer 0: GATConv(128->64, heads=2) + LeakyReLU + BN(128) ----
    xw0 = jnp.dot(x_bf, w0, preferred_element_type=jnp.float32)    # [N,128]
    sc0 = jnp.dot(x_bf, a0, preferred_element_type=jnp.float32)    # [N,4] (src0,dst0,src1,dst1)
    sc0_t = sc0.T                                                   # [4,N] (hoisted transpose)

    h0_heads = []
    for h in range(2):
        lo, hi = h * 64, (h + 1) * 64
        xh = xw0[:, lo:hi].astype(jnp.bfloat16)                     # [N,64]
        ho = _masked_softmax_attend(sc0[:, 2 * h + 1:2 * h + 2],    # dst col
                                    sc0_t[2 * h:2 * h + 1, :],      # src row
                                    adj_mask, xh)                   # [N,64]
        y = _leaky(ho + b0[:, lo:hi], NEG_SLOPE_ACT)
        h0_heads.append(_bn(y, g0[:, lo:hi], be0[:, lo:hi]))        # stays in vregs

    # ---- layer 1: GATConv(128->64, heads=1) + LeakyReLU + BN(64) ----
    z = (jnp.dot(h0_heads[0].astype(jnp.bfloat16), w1a_h0,
                 preferred_element_type=jnp.float32)
         + jnp.dot(h0_heads[1].astype(jnp.bfloat16), w1a_h1,
                   preferred_element_type=jnp.float32))             # [N,66]
    xw1 = z[:, :64]
    sc1 = z[:, 64:66]                                               # [:,0]=src, [:,1]=dst
    ho1 = _masked_softmax_attend(sc1[:, 1:2], sc1[:, 0:1].T, adj_mask,
                                 xw1.astype(jnp.bfloat16))          # [N,64]
    h1 = _bn(_leaky(ho1 + b1, NEG_SLOPE_ACT), g1, be1)              # [N,64]

    # ---- index_select: idx in SMEM + exact dynamic row gather ----
    h1_scratch[...] = h1
    rows = [h1_scratch[pl.ds(idx_ref[i], 1), :] for i in range(m_rows)]
    h_sel = jnp.concatenate(rows, axis=0)                           # [M,64]

    # ---- MLP 192->64->32->5 (+sigmoid); concat avoided by splitting mlp.0 weight ----
    a1 = _leaky(jnp.dot(h_sel.astype(jnp.bfloat16), mw1h,
                        preferred_element_type=jnp.float32)
                + jnp.dot(msg_ref[...].astype(jnp.bfloat16), mw1m,
                          preferred_element_type=jnp.float32)
                + mb1, NEG_SLOPE_ACT)                               # [M,64]
    a2 = _leaky(jnp.dot(a1.astype(jnp.bfloat16), mw2,
                        preferred_element_type=jnp.float32)
                + mb2, NEG_SLOPE_ACT)                               # [M,32]
    logits = (jnp.dot(a2.astype(jnp.bfloat16), mw3,
                      preferred_element_type=jnp.float32)
              + mb3)                                                # [M,128] lane-dense
    logits_ref[...] = logits

    # stable sigmoid (exact divide; tiny [M,128])
    e = jnp.exp(-jnp.abs(logits))
    denom = 1.0 + e
    sig_ref[...] = jnp.where(logits >= 0, 1.0 / denom, e / denom)


def _build_att_fold(w, att_src, att_dst):
    """Return w @ att_mat where att_mat is the block-diagonal [H*C, 2H] score matrix."""
    h_cnt, c = att_src.shape
    att_mat = jnp.zeros((h_cnt * c, 2 * h_cnt), jnp.float32)
    for h in range(h_cnt):
        att_mat = att_mat.at[h * c:(h + 1) * c, 2 * h].set(att_src[h])
        att_mat = att_mat.at[h * c:(h + 1) * c, 2 * h + 1].set(att_dst[h])
    return w @ att_mat


def _prep_params(p):
    # bf16 weight slab [672, 128]
    bw = jnp.zeros((672, 128), jnp.float32)
    bw = bw.at[0:128, :].set(p["w0"])
    bw = bw.at[128:256, :4].set(_build_att_fold(p["w0"], p["as0"], p["ad0"]))
    w1aug = jnp.concatenate(
        [p["w1"], _build_att_fold(p["w1"], p["as1"], p["ad1"])], axis=1)   # [128,66]
    bw = bw.at[256:320, :66].set(w1aug[:64])
    bw = bw.at[320:384, :66].set(w1aug[64:])
    bw = bw.at[384:448, :64].set(p["mw1"][:64])
    bw = bw.at[448:576, :64].set(p["mw1"][64:])
    bw = bw.at[576:640, :32].set(p["mw2"])
    bw = bw.at[640:672, :5].set(p["mw3"])
    bw = bw.astype(jnp.bfloat16)

    # f32 small-parameter slab [9, 128]
    fs = jnp.zeros((9, 128), jnp.float32)
    fs = fs.at[0:1, :].set(p["b0"])
    fs = fs.at[1:2, :].set(p["g0"])
    fs = fs.at[2:3, :].set(p["be0"])
    fs = fs.at[3:4, :64].set(p["b1"])
    fs = fs.at[4:5, :64].set(p["g1"])
    fs = fs.at[5:6, :64].set(p["be1"])
    fs = fs.at[6:7, :64].set(p["mb1"])
    fs = fs.at[7:8, :32].set(p["mb2"])
    fs = fs.at[8:9, :5].set(p["mb3"])
    return bw, fs


def forward(params, x, adj_i8, idx, msg):
    n = x.shape[0]
    m = idx.shape[0]
    bw, fs = _prep_params(params)
    idx_i32 = idx.astype(jnp.int32)

    try:  # per-generation VMEM budget (v5e/v6e: 128 MiB phys, v7x: 64 MiB)
        vmem_limit = int(pltpu.get_tpu_info().vmem_capacity_bytes * 0.9)
    except Exception:
        vmem_limit = 64 * 1024 * 1024

    logits_p, sig_p = pl.pallas_call(
        fused_kernel,
        out_shape=(jax.ShapeDtypeStruct((m, 128), jnp.float32),
                   jax.ShapeDtypeStruct((m, 128), jnp.float32)),
        in_specs=[
            pl.BlockSpec(memory_space=pltpu.MemorySpace.VMEM),   # x
            pl.BlockSpec(memory_space=pltpu.MemorySpace.VMEM),   # adj (int8)
            pl.BlockSpec(memory_space=pltpu.MemorySpace.SMEM),   # idx (scalars)
            pl.BlockSpec(memory_space=pltpu.MemorySpace.VMEM),   # msg
            pl.BlockSpec(memory_space=pltpu.MemorySpace.VMEM),   # bf16 weight slab
            pl.BlockSpec(memory_space=pltpu.MemorySpace.VMEM),   # f32 bias/BN slab
        ],
        out_specs=(pl.BlockSpec(memory_space=pltpu.MemorySpace.VMEM),
                   pl.BlockSpec(memory_space=pltpu.MemorySpace.VMEM)),
        scratch_shapes=[pltpu.VMEM((n, 64), jnp.float32)],        # h1 for row gather
        compiler_params=pltpu.CompilerParams(vmem_limit_bytes=vmem_limit),
    )(x, adj_i8, idx_i32, msg, bw, fs)

    return logits_p[:, :5], sig_p[:, :5]


if __name__ == "__main__":
    key = jax.random.PRNGKey(0)
    keys = jax.random.split(key, 16)

    N, F_IN, E, M = 8, 128, 16, 4

    # Inputs (data.x, data.edge_index -> dense int8 adjacency, data.idx, data.msg)
    x = jax.random.normal(keys[0], (N, F_IN), jnp.float32)
    src = jax.random.randint(keys[1], (E,), 0, N)
    dst = jax.random.randint(keys[2], (E,), 0, N)
    adj = jnp.zeros((N, N), jnp.int8).at[dst, src].set(1)          # adj[dst, src]
    adj = jnp.maximum(adj, jnp.eye(N, dtype=jnp.int8))             # add_self_loops=True
    idx = jnp.array([0, 2, 5, 7], dtype=jnp.int32)
    msg = jax.random.normal(keys[3], (M, 128), jnp.float32)

    def uinit(k, shape, fan_in):
        bound = (6.0 / fan_in) ** 0.5
        return jax.random.uniform(k, shape, jnp.float32, -bound, bound)

    params = dict(
        # conv_0: GATConv(128 -> 64, heads=2) ; bn_0: BatchNorm(128)
        w0=uinit(keys[4], (128, 128), 128),
        as0=uinit(keys[5], (2, 64), 64),
        ad0=uinit(keys[6], (2, 64), 64),
        b0=jnp.zeros((1, 128), jnp.float32),
        g0=jnp.ones((1, 128), jnp.float32),
        be0=jnp.zeros((1, 128), jnp.float32),
        # conv_1: GATConv(128 -> 64, heads=1) ; bn_1: BatchNorm(64)
        w1=uinit(keys[7], (128, 64), 128),
        as1=uinit(keys[8], (1, 64), 64),
        ad1=uinit(keys[9], (1, 64), 64),
        b1=jnp.zeros((1, 64), jnp.float32),
        g1=jnp.ones((1, 64), jnp.float32),
        be1=jnp.zeros((1, 64), jnp.float32),
        # mlp: 192 -> 64 -> 32 -> 5
        mw1=uinit(keys[10], (192, 64), 192), mb1=jnp.zeros((1, 64), jnp.float32),
        mw2=uinit(keys[11], (64, 32), 64),   mb2=jnp.zeros((1, 32), jnp.float32),
        mw3=uinit(keys[12], (32, 5), 32),    mb3=jnp.zeros((1, 5), jnp.float32),
    )

    fwd = jax.jit(forward)
    h_logits, out = fwd(params, x, adj, idx, msg)
    jax.block_until_ready((h_logits, out))
    assert h_logits.shape == (M, 5) and out.shape == (M, 5)
    assert bool(jnp.all(jnp.isfinite(h_logits))) and bool(jnp.all(jnp.isfinite(out)))
    assert bool(jnp.all((out >= 0.0) & (out <= 1.0)))
    print("KERNEL_OK")
</pallas_src>

<mosaic_0001>
module attributes {stable_mosaic.version = 11 : i64} {
  func.func @fused_kernel(%arg0: memref<8x128xf32, #tpu.memory_space<vmem>>, %arg1: memref<8x8xi8, #tpu.memory_space<vmem>>, %arg2: memref<4xi32, #tpu.memory_space<smem>>, %arg3: memref<4x128xf32, #tpu.memory_space<vmem>>, %arg4: memref<672x128xbf16, #tpu.memory_space<vmem>>, %arg5: memref<9x128xf32, #tpu.memory_space<vmem>>, %arg6: memref<4x128xf32, #tpu.memory_space<vmem>>, %arg7: memref<4x128xf32, #tpu.memory_space<vmem>>, %arg8: memref<8x64xf32, #tpu.memory_space<vmem>>) attributes {dimension_semantics = [], scalar_prefetch = 0 : i64, scratch_operands = 1 : i64, tpu.core_type = #tpu.core_type<tc>} {
    %c0 = arith.constant 0 : index
    %c0_0 = arith.constant 0 : index
    %0 = vector.load %arg1[%c0, %c0_0] : memref<8x8xi8, #tpu.memory_space<vmem>>, vector<8x8xi8>
    %c0_i8 = arith.constant 0 : i8
    %1 = vector.broadcast %c0_i8 : i8 to vector<8x8xi8>
    %2 = arith.cmpi ne, %0, %1 : vector<8x8xi8>
    %c0_1 = arith.constant 0 : index
    %c0_2 = arith.constant 0 : index
    %3 = vector.load %arg4[%c0_1, %c0_2] : memref<672x128xbf16, #tpu.memory_space<vmem>>, vector<128x128xbf16>
    %c128 = arith.constant 128 : index
    %c0_3 = arith.constant 0 : index
    %4 = vector.load %arg4[%c128, %c0_3] : memref<672x128xbf16, #tpu.memory_space<vmem>>, vector<128x4xbf16>
    %c256 = arith.constant 256 : index
    %c0_4 = arith.constant 0 : index
    %5 = vector.load %arg4[%c256, %c0_4] : memref<672x128xbf16, #tpu.memory_space<vmem>>, vector<64x66xbf16>
    %c320 = arith.constant 320 : index
    %c0_5 = arith.constant 0 : index
    %6 = vector.load %arg4[%c320, %c0_5] : memref<672x128xbf16, #tpu.memory_space<vmem>>, vector<64x66xbf16>
    %c384 = arith.constant 384 : index
    %c0_6 = arith.constant 0 : index
    %7 = vector.load %arg4[%c384, %c0_6] : memref<672x128xbf16, #tpu.memory_space<vmem>>, vector<64x64xbf16>
    %c448 = arith.constant 448 : index
    %c0_7 = arith.constant 0 : index
    %8 = vector.load %arg4[%c448, %c0_7] : memref<672x128xbf16, #tpu.memory_space<vmem>>, vector<128x64xbf16>
    %c576 = arith.constant 576 : index
    %c0_8 = arith.constant 0 : index
    %9 = vector.load %arg4[%c576, %c0_8] : memref<672x128xbf16, #tpu.memory_space<vmem>>, vector<64x32xbf16>
    %c640 = arith.constant 640 : index
    %c0_9 = arith.constant 0 : index
    %10 = vector.load %arg4[%c640, %c0_9] : memref<672x128xbf16, #tpu.memory_space<vmem>>, vector<32x128xbf16>
    %c0_10 = arith.constant 0 : index
    %c0_11 = arith.constant 0 : index
    %11 = vector.load %arg5[%c0_10, %c0_11] : memref<9x128xf32, #tpu.memory_space<vmem>>, vector<9x128xf32>
    %12 = vector.extract_strided_slice %11 {offsets = [0, 0], sizes = [1, 128], strides = [1, 1]} : vector<9x128xf32> to vector<1x128xf32>
    %13 = vector.extract_strided_slice %11 {offsets = [1, 0], sizes = [1, 128], strides = [1, 1]} : vector<9x128xf32> to vector<1x128xf32>
    %14 = vector.extract_strided_slice %11 {offsets = [2, 0], sizes = [1, 128], strides = [1, 1]} : vector<9x128xf32> to vector<1x128xf32>
    %15 = vector.extract_strided_slice %11 {offsets = [3, 0], sizes = [1, 64], strides = [1, 1]} : vector<9x128xf32> to vector<1x64xf32>
    %16 = vector.extract_strided_slice %11 {offsets = [4, 0], sizes = [1, 64], strides = [1, 1]} : vector<9x128xf32> to vector<1x64xf32>
    %17 = vector.extract_strided_slice %11 {offsets = [5, 0], sizes = [1, 64], strides = [1, 1]} : vector<9x128xf32> to vector<1x64xf32>
    %18 = vector.extract_strided_slice %11 {offsets = [6, 0], sizes = [1, 64], strides = [1, 1]} : vector<9x128xf32> to vector<1x64xf32>
    %19 = vector.extract_strided_slice %11 {offsets = [7, 0], sizes = [1, 32], strides = [1, 1]} : vector<9x128xf32> to vector<1x32xf32>
    %20 = vector.extract_strided_slice %11 {offsets = [8, 0], sizes = [1, 128], strides = [1, 1]} : vector<9x128xf32> to vector<1x128xf32>
    %c0_12 = arith.constant 0 : index
    %c0_13 = arith.constant 0 : index
    %21 = vector.load %arg0[%c0_12, %c0_13] : memref<8x128xf32, #tpu.memory_space<vmem>>, vector<8x128xf32>
    %22 = arith.truncf %21 : vector<8x128xf32> to vector<8x128xbf16>
    %cst = arith.constant dense<0.000000e+00> : vector<8x128xf32>
    %23 = tpu.matmul %22, %3, %cst {dimension_numbers = #tpu.dot_dimension_numbers<[1], [0], [0], [1], [0, 0, 1, 1], [], []>} : vector<8x128xbf16>, vector<128x128xbf16>, vector<8x128xf32> -> vector<8x128xf32>
    %cst_14 = arith.constant dense<0.000000e+00> : vector<8x4xf32>
    %24 = tpu.matmul %22, %4, %cst_14 {dimension_numbers = #tpu.dot_dimension_numbers<[1], [0], [0], [1], [0, 0, 1, 1], [], []>} : vector<8x128xbf16>, vector<128x4xbf16>, vector<8x4xf32> -> vector<8x4xf32>
    %25 = tpu.transpose %24, [1, 0] : vector<8x4xf32> -> vector<4x8xf32>
    %26 = vector.extract_strided_slice %23 {offsets = [0, 0], sizes = [8, 64], strides = [1, 1]} : vector<8x128xf32> to vector<8x64xf32>
    %27 = arith.truncf %26 : vector<8x64xf32> to vector<8x64xbf16>
    %28 = vector.extract_strided_slice %24 {offsets = [0, 1], sizes = [8, 1], strides = [1, 1]} : vector<8x4xf32> to vector<8x1xf32>
    %29 = vector.extract_strided_slice %25 {offsets = [0, 0], sizes = [1, 8], strides = [1, 1]} : vector<4x8xf32> to vector<1x8xf32>
    %30 = vector.broadcast %28 : vector<8x1xf32> to vector<8x8xf32>
    %31 = vector.broadcast %29 : vector<1x8xf32> to vector<8x8xf32>
    %32 = arith.addf %30, %31 : vector<8x8xf32>
    %cst_15 = arith.constant 0.000000e+00 : f32
    %33 = vector.broadcast %cst_15 : f32 to vector<8x8xf32>
    %34 = arith.cmpf oge, %32, %33 : vector<8x8xf32>
    %cst_16 = arith.constant 2.000000e-01 : f32
    %35 = vector.broadcast %cst_16 : f32 to vector<8x8xf32>
    %36 = arith.mulf %35, %32 : vector<8x8xf32>
    %37 = arith.select %34, %32, %36 : vector<8x8xi1>, vector<8x8xf32>
    %cst_17 = arith.constant -1.000000e+30 : f32
    %38 = vector.broadcast %cst_17 : f32 to vector<8x8xf32>
    %39 = arith.select %2, %37, %38 : vector<8x8xi1>, vector<8x8xf32>
    %cst_18 = arith.constant dense<0xFF800000> : vector<8xf32>
    %40 = vector.multi_reduction <maximumf>, %39, %cst_18 [1] : vector<8x8xf32> to vector<8xf32>
    %41 = vector.shape_cast %40 : vector<8xf32> to vector<8x1xf32>
    %42 = vector.broadcast %41 : vector<8x1xf32> to vector<8x8xf32>
    %43 = arith.subf %39, %42 : vector<8x8xf32>
    %44 = math.exp %43 : vector<8x8xf32>
    %cst_19 = arith.constant dense<0.000000e+00> : vector<8xf32>
    %45 = vector.multi_reduction <add>, %44, %cst_19 [1] : vector<8x8xf32> to vector<8xf32>
    %46 = vector.shape_cast %45 : vector<8xf32> to vector<8x1xf32>
    %47 = tpu.reciprocal %46 {approx = true} : vector<8x1xf32> -> vector<8x1xf32>
    %48 = vector.broadcast %47 : vector<8x1xf32> to vector<8x8xf32>
    %49 = arith.mulf %44, %48 : vector<8x8xf32>
    %50 = arith.truncf %49 : vector<8x8xf32> to vector<8x8xbf16>
    %cst_20 = arith.constant dense<0.000000e+00> : vector<8x64xf32>
    %51 = tpu.matmul %50, %27, %cst_20 {dimension_numbers = #tpu.dot_dimension_numbers<[1], [0], [0], [1], [0, 0, 1, 1], [], []>} : vector<8x8xbf16>, vector<8x64xbf16>, vector<8x64xf32> -> vector<8x64xf32>
    %52 = vector.extract_strided_slice %12 {offsets = [0, 0], sizes = [1, 64], strides = [1, 1]} : vector<1x128xf32> to vector<1x64xf32>
    %53 = vector.broadcast %52 : vector<1x64xf32> to vector<8x64xf32>
    %54 = arith.addf %51, %53 : vector<8x64xf32>
    %cst_21 = arith.constant 0.000000e+00 : f32
    %55 = vector.broadcast %cst_21 : f32 to vector<8x64xf32>
    %56 = arith.cmpf oge, %54, %55 : vector<8x64xf32>
    %cst_22 = arith.constant 0.00999999977 : f32
    %57 = vector.broadcast %cst_22 : f32 to vector<8x64xf32>
    %58 = arith.mulf %57, %54 : vector<8x64xf32>
    %59 = arith.select %56, %54, %58 : vector<8x64xi1>, vector<8x64xf32>
    %60 = vector.extract_strided_slice %13 {offsets = [0, 0], sizes = [1, 64], strides = [1, 1]} : vector<1x128xf32> to vector<1x64xf32>
    %61 = vector.extract_strided_slice %14 {offsets = [0, 0], sizes = [1, 64], strides = [1, 1]} : vector<1x128xf32> to vector<1x64xf32>
    %cst_23 = arith.constant dense<0.000000e+00> : vector<64xf32>
    %62 = vector.multi_reduction <add>, %59, %cst_23 [0] : vector<8x64xf32> to vector<64xf32>
    %63 = vector.shape_cast %62 : vector<64xf32> to vector<1x64xf32>
    %cst_24 = arith.constant 8.000000e+00 : f32
    %64 = vector.broadcast %cst_24 : f32 to vector<1x64xf32>
    %65 = arith.divf %63, %64 : vector<1x64xf32>
    %66 = arith.mulf %59, %59 : vector<8x64xf32>
    %cst_25 = arith.constant dense<0.000000e+00> : vector<64xf32>
    %67 = vector.multi_reduction <add>, %66, %cst_25 [0] : vector<8x64xf32> to vector<64xf32>
    %68 = vector.shape_cast %67 : vector<64xf32> to vector<1x64xf32>
    %cst_26 = arith.constant 8.000000e+00 : f32
    %69 = vector.broadcast %cst_26 : f32 to vector<1x64xf32>
    %70 = arith.divf %68, %69 : vector<1x64xf32>
    %71 = arith.mulf %65, %65 : vector<1x64xf32>
    %72 = arith.subf %70, %71 : vector<1x64xf32>
    %73 = vector.broadcast %65 : vector<1x64xf32> to vector<8x64xf32>
    %74 = arith.subf %59, %73 : vector<8x64xf32>
    %cst_27 = arith.constant 9.99999974E-6 : f32
    %75 = vector.broadcast %cst_27 : f32 to vector<1x64xf32>
    %76 = arith.addf %72, %75 : vector<1x64xf32>
    %77 = math.rsqrt %76 : vector<1x64xf32>
    %78 = vector.broadcast %77 : vector<1x64xf32> to vector<8x64xf32>
    %79 = arith.mulf %74, %78 : vector<8x64xf32>
    %80 = vector.broadcast %60 : vector<1x64xf32> to vector<8x64xf32>
    %81 = arith.mulf %79, %80 : vector<8x64xf32>
    %82 = vector.broadcast %61 : vector<1x64xf32> to vector<8x64xf32>
    %83 = arith.addf %81, %82 : vector<8x64xf32>
    %84 = vector.extract_strided_slice %23 {offsets = [0, 64], sizes = [8, 64], strides = [1, 1]} : vector<8x128xf32> to vector<8x64xf32>
    %85 = arith.truncf %84 : vector<8x64xf32> to vector<8x64xbf16>
    %86 = vector.extract_strided_slice %24 {offsets = [0, 3], sizes = [8, 1], strides = [1, 1]} : vector<8x4xf32> to vector<8x1xf32>
    %87 = vector.extract_strided_slice %25 {offsets = [2, 0], sizes = [1, 8], strides = [1, 1]} : vector<4x8xf32> to vector<1x8xf32>
    %88 = vector.broadcast %86 : vector<8x1xf32> to vector<8x8xf32>
    %89 = vector.broadcast %87 : vector<1x8xf32> to vector<8x8xf32>
    %90 = arith.addf %88, %89 : vector<8x8xf32>
    %cst_28 = arith.constant 0.000000e+00 : f32
    %91 = vector.broadcast %cst_28 : f32 to vector<8x8xf32>
    %92 = arith.cmpf oge, %90, %91 : vector<8x8xf32>
    %cst_29 = arith.constant 2.000000e-01 : f32
    %93 = vector.broadcast %cst_29 : f32 to vector<8x8xf32>
    %94 = arith.mulf %93, %90 : vector<8x8xf32>
    %95 = arith.select %92, %90, %94 : vector<8x8xi1>, vector<8x8xf32>
    %cst_30 = arith.constant -1.000000e+30 : f32
    %96 = vector.broadcast %cst_30 : f32 to vector<8x8xf32>
    %97 = arith.select %2, %95, %96 : vector<8x8xi1>, vector<8x8xf32>
    %cst_31 = arith.constant dense<0xFF800000> : vector<8xf32>
    %98 = vector.multi_reduction <maximumf>, %97, %cst_31 [1] : vector<8x8xf32> to vector<8xf32>
    %99 = vector.shape_cast %98 : vector<8xf32> to vector<8x1xf32>
    %100 = vector.broadcast %99 : vector<8x1xf32> to vector<8x8xf32>
    %101 = arith.subf %97, %100 : vector<8x8xf32>
    %102 = math.exp %101 : vector<8x8xf32>
    %cst_32 = arith.constant dense<0.000000e+00> : vector<8xf32>
    %103 = vector.multi_reduction <add>, %102, %cst_32 [1] : vector<8x8xf32> to vector<8xf32>
    %104 = vector.shape_cast %103 : vector<8xf32> to vector<8x1xf32>
    %105 = tpu.reciprocal %104 {approx = true} : vector<8x1xf32> -> vector<8x1xf32>
    %106 = vector.broadcast %105 : vector<8x1xf32> to vector<8x8xf32>
    %107 = arith.mulf %102, %106 : vector<8x8xf32>
    %108 = arith.truncf %107 : vector<8x8xf32> to vector<8x8xbf16>
    %cst_33 = arith.constant dense<0.000000e+00> : vector<8x64xf32>
    %109 = tpu.matmul %108, %85, %cst_33 {dimension_numbers = #tpu.dot_dimension_numbers<[1], [0], [0], [1], [0, 0, 1, 1], [], []>} : vector<8x8xbf16>, vector<8x64xbf16>, vector<8x64xf32> -> vector<8x64xf32>
    %110 = vector.extract_strided_slice %12 {offsets = [0, 64], sizes = [1, 64], strides = [1, 1]} : vector<1x128xf32> to vector<1x64xf32>
    %111 = vector.broadcast %110 : vector<1x64xf32> to vector<8x64xf32>
    %112 = arith.addf %109, %111 : vector<8x64xf32>
    %cst_34 = arith.constant 0.000000e+00 : f32
    %113 = vector.broadcast %cst_34 : f32 to vector<8x64xf32>
    %114 = arith.cmpf oge, %112, %113 : vector<8x64xf32>
    %cst_35 = arith.constant 0.00999999977 : f32
    %115 = vector.broadcast %cst_35 : f32 to vector<8x64xf32>
    %116 = arith.mulf %115, %112 : vector<8x64xf32>
    %117 = arith.select %114, %112, %116 : vector<8x64xi1>, vector<8x64xf32>
    %118 = vector.extract_strided_slice %13 {offsets = [0, 64], sizes = [1, 64], strides = [1, 1]} : vector<1x128xf32> to vector<1x64xf32>
    %119 = vector.extract_strided_slice %14 {offsets = [0, 64], sizes = [1, 64], strides = [1, 1]} : vector<1x128xf32> to vector<1x64xf32>
    %cst_36 = arith.constant dense<0.000000e+00> : vector<64xf32>
    %120 = vector.multi_reduction <add>, %117, %cst_36 [0] : vector<8x64xf32> to vector<64xf32>
    %121 = vector.shape_cast %120 : vector<64xf32> to vector<1x64xf32>
    %cst_37 = arith.constant 8.000000e+00 : f32
    %122 = vector.broadcast %cst_37 : f32 to vector<1x64xf32>
    %123 = arith.divf %121, %122 : vector<1x64xf32>
    %124 = arith.mulf %117, %117 : vector<8x64xf32>
    %cst_38 = arith.constant dense<0.000000e+00> : vector<64xf32>
    %125 = vector.multi_reduction <add>, %124, %cst_38 [0] : vector<8x64xf32> to vector<64xf32>
    %126 = vector.shape_cast %125 : vector<64xf32> to vector<1x64xf32>
    %cst_39 = arith.constant 8.000000e+00 : f32
    %127 = vector.broadcast %cst_39 : f32 to vector<1x64xf32>
    %128 = arith.divf %126, %127 : vector<1x64xf32>
    %129 = arith.mulf %123, %123 : vector<1x64xf32>
    %130 = arith.subf %128, %129 : vector<1x64xf32>
    %131 = vector.broadcast %123 : vector<1x64xf32> to vector<8x64xf32>
    %132 = arith.subf %117, %131 : vector<8x64xf32>
    %cst_40 = arith.constant 9.99999974E-6 : f32
    %133 = vector.broadcast %cst_40 : f32 to vector<1x64xf32>
    %134 = arith.addf %130, %133 : vector<1x64xf32>
    %135 = math.rsqrt %134 : vector<1x64xf32>
    %136 = vector.broadcast %135 : vector<1x64xf32> to vector<8x64xf32>
    %137 = arith.mulf %132, %136 : vector<8x64xf32>
    %138 = vector.broadcast %118 : vector<1x64xf32> to vector<8x64xf32>
    %139 = arith.mulf %137, %138 : vector<8x64xf32>
    %140 = vector.broadcast %119 : vector<1x64xf32> to vector<8x64xf32>
    %141 = arith.addf %139, %140 : vector<8x64xf32>
    %142 = arith.truncf %83 : vector<8x64xf32> to vector<8x64xbf16>
    %cst_41 = arith.constant dense<0.000000e+00> : vector<8x66xf32>
    %143 = tpu.matmul %142, %5, %cst_41 {dimension_numbers = #tpu.dot_dimension_numbers<[1], [0], [0], [1], [0, 0, 1, 1], [], []>} : vector<8x64xbf16>, vector<64x66xbf16>, vector<8x66xf32> -> vector<8x66xf32>
    %144 = arith.truncf %141 : vector<8x64xf32> to vector<8x64xbf16>
    %cst_42 = arith.constant dense<0.000000e+00> : vector<8x66xf32>
    %145 = tpu.matmul %144, %6, %cst_42 {dimension_numbers = #tpu.dot_dimension_numbers<[1], [0], [0], [1], [0, 0, 1, 1], [], []>} : vector<8x64xbf16>, vector<64x66xbf16>, vector<8x66xf32> -> vector<8x66xf32>
    %146 = arith.addf %143, %145 : vector<8x66xf32>
    %147 = vector.extract_strided_slice %146 {offsets = [0, 0], sizes = [8, 64], strides = [1, 1]} : vector<8x66xf32> to vector<8x64xf32>
    %148 = vector.extract_strided_slice %146 {offsets = [0, 64], sizes = [8, 2], strides = [1, 1]} : vector<8x66xf32> to vector<8x2xf32>
    %149 = vector.extract_strided_slice %148 {offsets = [0, 1], sizes = [8, 1], strides = [1, 1]} : vector<8x2xf32> to vector<8x1xf32>
    %150 = vector.extract_strided_slice %148 {offsets = [0, 0], sizes = [8, 1], strides = [1, 1]} : vector<8x2xf32> to vector<8x1xf32>
    %151 = tpu.transpose %150, [1, 0] : vector<8x1xf32> -> vector<1x8xf32>
    %152 = arith.truncf %147 : vector<8x64xf32> to vector<8x64xbf16>
    %153 = vector.broadcast %149 : vector<8x1xf32> to vector<8x8xf32>
    %154 = vector.broadcast %151 : vector<1x8xf32> to vector<8x8xf32>
    %155 = arith.addf %153, %154 : vector<8x8xf32>
    %cst_43 = arith.constant 0.000000e+00 : f32
    %156 = vector.broadcast %cst_43 : f32 to vector<8x8xf32>
    %157 = arith.cmpf oge, %155, %156 : vector<8x8xf32>
    %cst_44 = arith.constant 2.000000e-01 : f32
    %158 = vector.broadcast %cst_44 : f32 to vector<8x8xf32>
    %159 = arith.mulf %158, %155 : vector<8x8xf32>
    %160 = arith.select %157, %155, %159 : vector<8x8xi1>, vector<8x8xf32>
    %cst_45 = arith.constant -1.000000e+30 : f32
    %161 = vector.broadcast %cst_45 : f32 to vector<8x8xf32>
    %162 = arith.select %2, %160, %161 : vector<8x8xi1>, vector<8x8xf32>
    %cst_46 = arith.constant dense<0xFF800000> : vector<8xf32>
    %163 = vector.multi_reduction <maximumf>, %162, %cst_46 [1] : vector<8x8xf32> to vector<8xf32>
    %164 = vector.shape_cast %163 : vector<8xf32> to vector<8x1xf32>
    %165 = vector.broadcast %164 : vector<8x1xf32> to vector<8x8xf32>
    %166 = arith.subf %162, %165 : vector<8x8xf32>
    %167 = math.exp %166 : vector<8x8xf32>
    %cst_47 = arith.constant dense<0.000000e+00> : vector<8xf32>
    %168 = vector.multi_reduction <add>, %167, %cst_47 [1] : vector<8x8xf32> to vector<8xf32>
    %169 = vector.shape_cast %168 : vector<8xf32> to vector<8x1xf32>
    %170 = tpu.reciprocal %169 {approx = true} : vector<8x1xf32> -> vector<8x1xf32>
    %171 = vector.broadcast %170 : vector<8x1xf32> to vector<8x8xf32>
    %172 = arith.mulf %167, %171 : vector<8x8xf32>
    %173 = arith.truncf %172 : vector<8x8xf32> to vector<8x8xbf16>
    %cst_48 = arith.constant dense<0.000000e+00> : vector<8x64xf32>
    %174 = tpu.matmul %173, %152, %cst_48 {dimension_numbers = #tpu.dot_dimension_numbers<[1], [0], [0], [1], [0, 0, 1, 1], [], []>} : vector<8x8xbf16>, vector<8x64xbf16>, vector<8x64xf32> -> vector<8x64xf32>
    %175 = vector.broadcast %15 : vector<1x64xf32> to vector<8x64xf32>
    %176 = arith.addf %174, %175 : vector<8x64xf32>
    %cst_49 = arith.constant 0.000000e+00 : f32
    %177 = vector.broadcast %cst_49 : f32 to vector<8x64xf32>
    %178 = arith.cmpf oge, %176, %177 : vector<8x64xf32>
    %cst_50 = arith.constant 0.00999999977 : f32
    %179 = vector.broadcast %cst_50 : f32 to vector<8x64xf32>
    %180 = arith.mulf %179, %176 : vector<8x64xf32>
    %181 = arith.select %178, %176, %180 : vector<8x64xi1>, vector<8x64xf32>
    %cst_51 = arith.constant dense<0.000000e+00> : vector<64xf32>
    %182 = vector.multi_reduction <add>, %181, %cst_51 [0] : vector<8x64xf32> to vector<64xf32>
    %183 = vector.shape_cast %182 : vector<64xf32> to vector<1x64xf32>
    %cst_52 = arith.constant 8.000000e+00 : f32
    %184 = vector.broadcast %cst_52 : f32 to vector<1x64xf32>
    %185 = arith.divf %183, %184 : vector<1x64xf32>
    %186 = arith.mulf %181, %181 : vector<8x64xf32>
    %cst_53 = arith.constant dense<0.000000e+00> : vector<64xf32>
    %187 = vector.multi_reduction <add>, %186, %cst_53 [0] : vector<8x64xf32> to vector<64xf32>
    %188 = vector.shape_cast %187 : vector<64xf32> to vector<1x64xf32>
    %cst_54 = arith.constant 8.000000e+00 : f32
    %189 = vector.broadcast %cst_54 : f32 to vector<1x64xf32>
    %190 = arith.divf %188, %189 : vector<1x64xf32>
    %191 = arith.mulf %185, %185 : vector<1x64xf32>
    %192 = arith.subf %190, %191 : vector<1x64xf32>
    %193 = vector.broadcast %185 : vector<1x64xf32> to vector<8x64xf32>
    %194 = arith.subf %181, %193 : vector<8x64xf32>
    %cst_55 = arith.constant 9.99999974E-6 : f32
    %195 = vector.broadcast %cst_55 : f32 to vector<1x64xf32>
    %196 = arith.addf %192, %195 : vector<1x64xf32>
    %197 = math.rsqrt %196 : vector<1x64xf32>
    %198 = vector.broadcast %197 : vector<1x64xf32> to vector<8x64xf32>
    %199 = arith.mulf %194, %198 : vector<8x64xf32>
    %200 = vector.broadcast %16 : vector<1x64xf32> to vector<8x64xf32>
    %201 = arith.mulf %199, %200 : vector<8x64xf32>
    %202 = vector.broadcast %17 : vector<1x64xf32> to vector<8x64xf32>
    %203 = arith.addf %201, %202 : vector<8x64xf32>
    %c0_56 = arith.constant 0 : index
    %c0_57 = arith.constant 0 : index
    %204 = vector.load %arg8[%c0_56, %c0_57] : memref<8x64xf32, #tpu.memory_space<vmem>>, vector<8x64xf32>
    tpu.vector_store %arg8[%c0_56, %c0_57], %203 {strides = array<i32>} : memref<8x64xf32, #tpu.memory_space<vmem>>, vector<8x64xf32>,
    %c0_58 = arith.constant 0 : index
    %205 = memref.load %arg2[%c0_58] : memref<4xi32, #tpu.memory_space<smem>>
    %206 = arith.index_cast %205 : i32 to index
    %c0_59 = arith.constant 0 : index
    %207 = vector.load %arg8[%206, %c0_59] : memref<8x64xf32, #tpu.memory_space<vmem>>, vector<1x64xf32>
    %c1 = arith.constant 1 : index
    %208 = memref.load %arg2[%c1] : memref<4xi32, #tpu.memory_space<smem>>
    %209 = arith.index_cast %208 : i32 to index
    %c0_60 = arith.constant 0 : index
    %210 = vector.load %arg8[%209, %c0_60] : memref<8x64xf32, #tpu.memory_space<vmem>>, vector<1x64xf32>
    %c2 = arith.constant 2 : index
    %211 = memref.load %arg2[%c2] : memref<4xi32, #tpu.memory_space<smem>>
    %212 = arith.index_cast %211 : i32 to index
    %c0_61 = arith.constant 0 : index
    %213 = vector.load %arg8[%212, %c0_61] : memref<8x64xf32, #tpu.memory_space<vmem>>, vector<1x64xf32>
    %c3 = arith.constant 3 : index
    %214 = memref.load %arg2[%c3] : memref<4xi32, #tpu.memory_space<smem>>
    %215 = arith.index_cast %214 : i32 to index
    %c0_62 = arith.constant 0 : index
    %216 = vector.load %arg8[%215, %c0_62] : memref<8x64xf32, #tpu.memory_space<vmem>>, vector<1x64xf32>
    %217 = tpu.concatenate %207, %210, %213, %216 in 0 : vector<1x64xf32>, vector<1x64xf32>, vector<1x64xf32>, vector<1x64xf32> -> vector<4x64xf32>
    %218 = arith.truncf %217 : vector<4x64xf32> to vector<4x64xbf16>
    %cst_63 = arith.constant dense<0.000000e+00> : vector<4x64xf32>
    %219 = tpu.matmul %218, %7, %cst_63 {dimension_numbers = #tpu.dot_dimension_numbers<[1], [0], [0], [1], [0, 0, 1, 1], [], []>} : vector<4x64xbf16>, vector<64x64xbf16>, vector<4x64xf32> -> vector<4x64xf32>
    %c0_64 = arith.constant 0 : index
    %c0_65 = arith.constant 0 : index
    %220 = vector.load %arg3[%c0_64, %c0_65] : memref<4x128xf32, #tpu.memory_space<vmem>>, vector<4x128xf32>
    %221 = arith.truncf %220 : vector<4x128xf32> to vector<4x128xbf16>
    %cst_66 = arith.constant dense<0.000000e+00> : vector<4x64xf32>
    %222 = tpu.matmul %221, %8, %cst_66 {dimension_numbers = #tpu.dot_dimension_numbers<[1], [0], [0], [1], [0, 0, 1, 1], [], []>} : vector<4x128xbf16>, vector<128x64xbf16>, vector<4x64xf32> -> vector<4x64xf32>
    %223 = arith.addf %219, %222 : vector<4x64xf32>
    %224 = vector.broadcast %18 : vector<1x64xf32> to vector<4x64xf32>
    %225 = arith.addf %223, %224 : vector<4x64xf32>
    %cst_67 = arith.constant 0.000000e+00 : f32
    %226 = vector.broadcast %cst_67 : f32 to vector<4x64xf32>
    %227 = arith.cmpf oge, %225, %226 : vector<4x64xf32>
    %cst_68 = arith.constant 0.00999999977 : f32
    %228 = vector.broadcast %cst_68 : f32 to vector<4x64xf32>
    %229 = arith.mulf %228, %225 : vector<4x64xf32>
    %230 = arith.select %227, %225, %229 : vector<4x64xi1>, vector<4x64xf32>
    %231 = arith.truncf %230 : vector<4x64xf32> to vector<4x64xbf16>
    %cst_69 = arith.constant dense<0.000000e+00> : vector<4x32xf32>
    %232 = tpu.matmul %231, %9, %cst_69 {dimension_numbers = #tpu.dot_dimension_numbers<[1], [0], [0], [1], [0, 0, 1, 1], [], []>} : vector<4x64xbf16>, vector<64x32xbf16>, vector<4x32xf32> -> vector<4x32xf32>
    %233 = vector.broadcast %19 : vector<1x32xf32> to vector<4x32xf32>
    %234 = arith.addf %232, %233 : vector<4x32xf32>
    %cst_70 = arith.constant 0.000000e+00 : f32
    %235 = vector.broadcast %cst_70 : f32 to vector<4x32xf32>
    %236 = arith.cmpf oge, %234, %235 : vector<4x32xf32>
    %cst_71 = arith.constant 0.00999999977 : f32
    %237 = vector.broadcast %cst_71 : f32 to vector<4x32xf32>
    %238 = arith.mulf %237, %234 : vector<4x32xf32>
    %239 = arith.select %236, %234, %238 : vector<4x32xi1>, vector<4x32xf32>
    %240 = arith.truncf %239 : vector<4x32xf32> to vector<4x32xbf16>
    %cst_72 = arith.constant dense<0.000000e+00> : vector<4x128xf32>
    %241 = tpu.matmul %240, %10, %cst_72 {dimension_numbers = #tpu.dot_dimension_numbers<[1], [0], [0], [1], [0, 0, 1, 1], [], []>} : vector<4x32xbf16>, vector<32x128xbf16>, vector<4x128xf32> -> vector<4x128xf32>
    %242 = vector.broadcast %20 : vector<1x128xf32> to vector<4x128xf32>
    %243 = arith.addf %241, %242 : vector<4x128xf32>
    %c0_73 = arith.constant 0 : index
    %c0_74 = arith.constant 0 : index
    %244 = vector.load %arg6[%c0_73, %c0_74] : memref<4x128xf32, #tpu.memory_space<vmem>>, vector<4x128xf32>
    tpu.vector_store %arg6[%c0_73, %c0_74], %243 {strides = array<i32>} : memref<4x128xf32, #tpu.memory_space<vmem>>, vector<4x128xf32>,
    %245 = math.absf %243 : vector<4x128xf32>
    %cst_75 = arith.constant 0.000000e+00 : f32
    %246 = vector.broadcast %cst_75 : f32 to vector<4x128xf32>
    %247 = arith.subf %246, %245 : vector<4x128xf32>
    %248 = math.exp %247 : vector<4x128xf32>
    %cst_76 = arith.constant 1.000000e+00 : f32
    %249 = vector.broadcast %cst_76 : f32 to vector<4x128xf32>
    %250 = arith.addf %249, %248 : vector<4x128xf32>
    %cst_77 = arith.constant 0.000000e+00 : f32
    %251 = vector.broadcast %cst_77 : f32 to vector<4x128xf32>
    %252 = arith.cmpf oge, %243, %251 : vector<4x128xf32>
    %cst_78 = arith.constant 1.000000e+00 : f32
    %253 = vector.broadcast %cst_78 : f32 to vector<4x128xf32>
    %254 = arith.divf %253, %250 : vector<4x128xf32>
    %255 = arith.divf %248, %250 : vector<4x128xf32>
    %256 = arith.select %252, %254, %255 : vector<4x128xi1>, vector<4x128xf32>
    %c0_79 = arith.constant 0 : index
    %c0_80 = arith.constant 0 : index
    %257 = vector.load %arg7[%c0_79, %c0_80] : memref<4x128xf32, #tpu.memory_space<vmem>>, vector<4x128xf32>
    tpu.vector_store %arg7[%c0_79, %c0_80], %256 {strides = array<i32>} : memref<4x128xf32, #tpu.memory_space<vmem>>, vector<4x128xf32>,
    return
  }
}

</mosaic_0001>

<llo_original>
// kernel: forward.1
$region0: #{forward.1}
  #allocation0 [shape = 'u32[]', space=smem, size = 0x4, offset = 0x4, fixed_abs, tag = 'smem constant byte address 0x4 - core index']
  #allocation1 [shape = 'u32[144,128]{1,0:T(1,128)}', space=vmem, size = 0x12000, scoped, tag = 'internal scratch']
  #allocation2 [shape = 'f32[8,64]{1,0:T(8,128)}', space=vmem, size = 0x1000, scoped, tag = 'scratch operand']
  %s0 = inlined_call_operand.vmem [shape: f32[8,128], index: 0, kind: input, shape index: {}]
  %s1 = inlined_call_operand.vmem [shape: s8[8,8], index: 1, kind: input, shape index: {}]
  %s2 = inlined_call_operand.vmem [shape: s32[4], index: 2, kind: input, shape index: {}]
  %s3 = inlined_call_operand.vmem [shape: f32[4,128], index: 3, kind: input, shape index: {}]
  %s4 = inlined_call_operand.vmem [shape: bf16[672,128], index: 4, kind: input, shape index: {}]
  %s5 = inlined_call_operand.vmem [shape: f32[9,128], index: 5, kind: input, shape index: {}]
  %s6 = inlined_call_operand.hbm [shape: f32[4,128], index: 6, kind: output, shape index: {0}]
  %s7 = inlined_call_operand.hbm [shape: f32[4,128], index: 7, kind: output, shape index: {1}]
  %8 = xla_tuple %s6, %s7
  %s9 = sld [smem:[#allocation0]]
  $region46: #{forward.1} parent=0
    _
  %s11 = ssub.s32 1, %s9
  %s12 = scalar_select 0, %s11, %s9
  $region1: #{forward.1} parent=0
    #allocation3 [shape = 'u8[512]{0}', space=smem, size = 0x200, scoped, tag = 'input window, operand 2, single buffered']
    #allocation4 [shape = 's32[1]{0}', space=sflag, size = 0x4, scoped, tag = 'scoped memory for forward.1']
    #allocation5 [shape = 's32[1]{0}', space=sflag, size = 0x4, scoped, tag = 'scoped memory for forward.1']
    #allocation6 [shape = 'u8[2048]{0}', space=vmem, size = 0x800, scoped, tag = 'output window, operand 0, single buffered']
    #allocation7 [shape = 'u8[2048]{0}', space=vmem, size = 0x800, scoped, tag = 'output window, operand 1, single buffered']
    #allocation8 [shape = 's32[1]{0}', space=sflag, size = 0x4, scoped, tag = 'scoped memory for forward.1']
    %13 = vsyncpa [#allocation5], 0
    %14 = vsyncpa [#allocation4], 0
    %15 = vsyncpa [#allocation8], 0
    // Predicated region
    $region2: #{forward.1} parent=1 // pred_check
      _
    $region3: #{forward.1} parent=1 // pred_check_branch
      %17 = sbr.rel (0) target = $region5
    $region4: #{forward.1} parent=1 // pred_region
      _
    $region5: #{forward.1} parent=1 // pred_fallthru
      _
    // Predicated region
    $region6: #{forward.1} parent=1 // pred_check
      _
    $region7: #{forward.1} parent=1 // pred_check_branch
      %19 = sbr.rel (0) target = $region9
    $region8: #{forward.1} parent=1 // pred_region
      _
    $region9: #{forward.1} parent=1 // pred_fallthru
      _
    // Predicated region
    $region10: #{forward.1} parent=1 // pred_check
      _
    $region11: #{forward.1} parent=1 // pred_check_branch
      %21 = sbr.rel (0) target = $region13
    $region12: #{forward.1} parent=1 // pred_region
      %s23 = ssub.s32 16, 16
      %24 = vsyncadd [#allocation5], %s23
      %s26 = sshll.u32 %s2, 4
      %s27 = int_to_ptr.vmem [resolvable:$true] %s26
      %29 = dma.vmem_to_smem %s27, 16, [#allocation3], [#allocation5]
    $region13: #{forward.1} parent=1 // pred_fallthru
      _
    // Predicated region
    $region14: #{forward.1} parent=1 // pred_check
      _
    $region15: #{forward.1} parent=1 // pred_check_branch
      %31 = sbr.rel (0) target = $region17
    $region16: #{forward.1} parent=1 // pred_region
      _
    $region17: #{forward.1} parent=1 // pred_fallthru
      _
    // Predicated region
    $region18: #{forward.1} parent=1 // pred_check
      _
    $region19: #{forward.1} parent=1 // pred_check_branch
      %33 = sbr.rel (0) target = $region21
    $region20: #{forward.1} parent=1 // pred_region
      _
    $region21: #{forward.1} parent=1 // pred_fallthru
      _
    // Predicated region
    $region22: #{forward.1} parent=1 // pred_check
      _
    $region23: #{forward.1} parent=1 // pred_check_branch
      %35 = sbr.rel (0) target = $region25
    $region24: #{forward.1} parent=1 // pred_region
      _
    $region25: #{forward.1} parent=1 // pred_fallthru
      _
    // Predicated region
    $region26: #{forward.1} parent=1 // pred_check
      _
    $region27: #{forward.1} parent=1 // pred_check_branch
      %37 = sbr.rel (0) target = $region29
    $region28: #{forward.1} parent=1 // pred_region
      %38 = dma.done [#allocation5], 16
    $region29: #{forward.1} parent=1 // pred_fallthru
      _
    %39 = sfence
    %v43 = vld [vmem:[%s1] sm:$0x3]
    %vm44 = vnez %v43
    %v45 = vld [vmem:[%s4] sm:$0xf]
    %v46 = vld [vmem:[%s4 + $0x4] sm:$0xf]
    %v47 = vld [vmem:[%s4 + $0x8] sm:$0xf]
    %v48 = vld [vmem:[%s4 + $0xc] sm:$0xf]
    %v49 = vld [vmem:[%s4 + $0x10] sm:$0xf]
    %v50 = vld [vmem:[%s4 + $0x14] sm:$0xf]
    %v51 = vld [vmem:[%s4 + $0x18] sm:$0xf]
    %v52 = vld [vmem:[%s4 + $0x1c] sm:$0xf]
    %v53 = vld [vmem:[%s4 + $0x20] sm:$0xf]
    %v54 = vld [vmem:[%s4 + $0x24] sm:$0xf]
    %v55 = vld [vmem:[%s4 + $0x28] sm:$0xf]
    %v56 = vld [vmem:[%s4 + $0x2c] sm:$0xf]
    %v57 = vld [vmem:[%s4 + $0x30] sm:$0xf]
    %v58 = vld [vmem:[%s4 + $0x34] sm:$0xf]
    %v59 = vld [vmem:[%s4 + $0x38] sm:$0xf]
    %v60 = vld [vmem:[%s4 + $0x3c] sm:$0xf]
    %v61 = vld [vmem:[%s4 + $0x40] sm:$0xf]
    %v62 = vld [vmem:[%s4 + $0x44] sm:$0xf]
    %v63 = vld [vmem:[%s4 + $0x48] sm:$0xf]
    %v64 = vld [vmem:[%s4 + $0x4c] sm:$0xf]
    %v65 = vld [vmem:[%s4 + $0x50] sm:$0xf]
    %v66 = vld [vmem:[%s4 + $0x54] sm:$0xf]
    %v67 = vld [vmem:[%s4 + $0x58] sm:$0xf]
    %v68 = vld [vmem:[%s4 + $0x5c] sm:$0xf]
    %v69 = vld [vmem:[%s4 + $0x60] sm:$0xf]
    %v70 = vld [vmem:[%s4 + $0x64] sm:$0xf]
    %v71 = vld [vmem:[%s4 + $0x68] sm:$0xf]
    %v72 = vld [vmem:[%s4 + $0x6c] sm:$0xf]
    %v73 = vld [vmem:[%s4 + $0x70] sm:$0xf]
    %v74 = vld [vmem:[%s4 + $0x74] sm:$0xf]
    %v75 = vld [vmem:[%s4 + $0x78] sm:$0xf]
    %v76 = vld [vmem:[%s4 + $0x7c] sm:$0xf]
    %v77 = vld [vmem:[%s4 + $0x80] sm:$0xf]
    %v78 = vld [vmem:[%s4 + $0x84] sm:$0xf]
    %v79 = vld [vmem:[%s4 + $0x88] sm:$0xf]
    %v80 = vld [vmem:[%s4 + $0x8c] sm:$0xf]
    %v81 = vld [vmem:[%s4 + $0x90] sm:$0xf]
    %v82 = vld [vmem:[%s4 + $0x94] sm:$0xf]
    %v83 = vld [vmem:[%s4 + $0x98] sm:$0xf]
    %v84 = vld [vmem:[%s4 + $0x9c] sm:$0xf]
    %v85 = vld [vmem:[%s4 + $0xa0] sm:$0xf]
    %v86 = vld [vmem:[%s4 + $0xa4] sm:$0xf]
    %v87 = vld [vmem:[%s4 + $0xa8] sm:$0xf]
    %v88 = vld [vmem:[%s4 + $0xac] sm:$0xf]
    %v89 = vld [vmem:[%s4 + $0xb0] sm:$0xf]
    %v90 = vld [vmem:[%s4 + $0xb4] sm:$0xf]
    %v91 = vld [vmem:[%s4 + $0xb8] sm:$0xf]
    %v92 = vld [vmem:[%s4 + $0xbc] sm:$0xf]
    %v93 = vld [vmem:[%s4 + $0xc0] sm:$0xf]
    %v94 = vld [vmem:[%s4 + $0xc4] sm:$0xf]
    %v95 = vld [vmem:[%s4 + $0xc8] sm:$0xf]
    %v96 = vld [vmem:[%s4 + $0xcc] sm:$0xf]
    %v97 = vld [vmem:[%s4 + $0xd0] sm:$0xf]
    %v98 = vld [vmem:[%s4 + $0xd4] sm:$0xf]
    %v99 = vld [vmem:[%s4 + $0xd8] sm:$0xf]
    %v100 = vld [vmem:[%s4 + $0xdc] sm:$0xf]
    %v101 = vld [vmem:[%s4 + $0xe0] sm:$0xf]
    %v102 = vld [vmem:[%s4 + $0xe4] sm:$0xf]
    %v103 = vld [vmem:[%s4 + $0xe8] sm:$0xf]
    %v104 = vld [vmem:[%s4 + $0xec] sm:$0xf]
    %v105 = vld [vmem:[%s4 + $0xf0] sm:$0xf]
    %v106 = vld [vmem:[%s4 + $0xf4] sm:$0xf]
    %v107 = vld [vmem:[%s4 + $0xf8] sm:$0xf]
    %v108 = vld [vmem:[%s4 + $0xfc] sm:$0xf]
    %v109 = vld [vmem:[%s4 + $0x100] sm:$0xf]
    %v110 = vld [vmem:[%s4 + $0x104] sm:$0xf]
    %v111 = vld [vmem:[%s4 + $0x108] sm:$0xf]
    %v112 = vld [vmem:[%s4 + $0x10c] sm:$0xf]
    %v113 = vld [vmem:[%s4 + $0x110] sm:$0xf]
    %v114 = vld [vmem:[%s4 + $0x114] sm:$0xf]
    %v115 = vld [vmem:[%s4 + $0x118] sm:$0xf]
    %v116 = vld [vmem:[%s4 + $0x11c] sm:$0xf]
    %v117 = vld [vmem:[%s4 + $0x120] sm:$0xf]
    %v118 = vld [vmem:[%s4 + $0x124] sm:$0xf]
    %v119 = vld [vmem:[%s4 + $0x128] sm:$0xf]
    %v120 = vld [vmem:[%s4 + $0x12c] sm:$0xf]
    %v121 = vld [vmem:[%s4 + $0x130] sm:$0xf]
    %v122 = vld [vmem:[%s4 + $0x134] sm:$0xf]
    %v123 = vld [vmem:[%s4 + $0x138] sm:$0xf]
    %v124 = vld [vmem:[%s4 + $0x13c] sm:$0xf]
    %v125 = vld [vmem:[%s4 + $0x140] sm:$0xf]
    %v126 = vld [vmem:[%s4 + $0x144] sm:$0xf]
    %v127 = vld [vmem:[%s4 + $0x148] sm:$0xf]
    %v128 = vld [vmem:[%s4 + $0x14c] sm:$0xf]
    %v129 = vld [vmem:[%s5] sm:$0xff]
    %v130 = vld [vmem:[%s5 + $0x8] sm:$0x1]
    %v131 = vld [vmem:[%s0] sm:$0xff]
    %v132 = vpack.c.bf16 %v131, %v131
    %v149 = vunpack.c.l.b16 %v45
    %v150 = vunpack.c.l.b16 %v46
    %v151 = vunpack.c.l.b16 %v47
    %v152 = vunpack.c.l.b16 %v48
    %v153 = vunpack.c.l.b16 %v49
    %v154 = vunpack.c.l.b16 %v50
    %v155 = vunpack.c.l.b16 %v51
    %v156 = vunpack.c.l.b16 %v52
    %v157 = vunpack.c.l.b16 %v53
    %v158 = vunpack.c.l.b16 %v54
    %v159 = vunpack.c.l.b16 %v55
    %v160 = vunpack.c.l.b16 %v56
    %v161 = vunpack.c.l.b16 %v57
    %v162 = vunpack.c.l.b16 %v58
    %v163 = vunpack.c.l.b16 %v59
    %v164 = vunpack.c.l.b16 %v60
    %v165 = vpack.c.b16 %v150, %v149
    %v166 = vpack.c.b16 %v152, %v151
    %v167 = vpack.c.b16 %v154, %v153
    %v168 = vpack.c.b16 %v156, %v155
    %v169 = vpack.c.b16 %v158, %v157
    %v170 = vpack.c.b16 %v160, %v159
    %v171 = vpack.c.b16 %v162, %v161
    %v172 = vpack.c.b16 %v164, %v163
    %181 = vmatprep.subr.bf16.mxu0 0
    %182 = vmatpush1.bf16.msra.mxu0 %v172
    %183 = vmatprep.subr.bf16.mxu0 0
    %184 = vmatpush1.bf16.msra.mxu0 %v171
    %185 = vmatprep.subr.bf16.mxu0 0
    %186 = vmatpush1.bf16.msra.mxu0 %v170
    %187 = vmatprep.subr.bf16.mxu0 0
    %188 = vmatpush1.bf16.msra.mxu0 %v169
    %189 = vmatprep.subr.bf16.mxu0 0
    %190 = vmatpush1.bf16.msra.mxu0 %v168
    %191 = vmatprep.subr.bf16.mxu0 0
    %192 = vmatpush1.bf16.msra.mxu0 %v167
    %193 = vmatprep.subr.bf16.mxu0 0
    %194 = vmatpush1.bf16.msra.mxu0 %v166
    %195 = vmatprep.subr.bf16.mxu0 0
    %196 = vmatpush1.bf16.msra.mxu0 %v165
    %197 = vmatprep.subr.bf16.mxu0 0
    %198 = vmatpush2.bf16.msra.mxu0 0
    %199 = vmatprep.subr.bf16.mxu0 0
    %200 = vmatpush2.bf16.msra.mxu0 0
    %201 = vmatprep.subr.bf16.mxu0 0
    %202 = vmatpush2.bf16.msra.mxu0 0
    %203 = vmatprep.subr.bf16.mxu0 0
    %204 = vmatpush2.bf16.msra.mxu0 0
    %205 = vmatprep.subr.bf16.mxu0 0
    %206 = vmatpush2.bf16.msra.mxu0 0
    %207 = vmatprep.subr.bf16.mxu0 0
    %208 = vmatpush2.bf16.msra.mxu0 0
    %209 = vmatprep.subr.bf16.mxu0 0
    %210 = vmatpush2.bf16.msra.mxu0 0
    %211 = vmatprep.subr.bf16.mxu0 0
    %212 = vmatpush2.bf16.msra.mxu0 0
    %213 = vmatprep.mubr.bf16.mxu0 0
    %214 = vmatmul.mubr.bf16.gmra.mxu0 %v132
    %v215 = vpop.f32.mrf.mxu0
    %v216 = vadd.f32 0.0, %v215
    %v217 = vpop.f32.mrf.mxu0
    %v218 = vpop.f32.mrf.mxu0
    %v219 = vpop.f32.mrf.mxu0
    %220 = vdwg.mxu0
    %v237 = vunpack.c.l.b16 %v61
    %v238 = vunpack.c.l.b16 %v62
    %v239 = vunpack.c.l.b16 %v63
    %v240 = vunpack.c.l.b16 %v64
    %v241 = vunpack.c.l.b16 %v65
    %v242 = vunpack.c.l.b16 %v66
    %v243 = vunpack.c.l.b16 %v67
    %v244 = vunpack.c.l.b16 %v68
    %v245 = vunpack.c.l.b16 %v69
    %v246 = vunpack.c.l.b16 %v70
    %v247 = vunpack.c.l.b16 %v71
    %v248 = vunpack.c.l.b16 %v72
    %v249 = vunpack.c.l.b16 %v73
    %v250 = vunpack.c.l.b16 %v74
    %v251 = vunpack.c.l.b16 %v75
    %v252 = vunpack.c.l.b16 %v76
    %v253 = vpack.c.b16 %v238, %v237
    %v254 = vpack.c.b16 %v240, %v239
    %v255 = vpack.c.b16 %v242, %v241
    %v256 = vpack.c.b16 %v244, %v243
    %v257 = vpack.c.b16 %v246, %v245
    %v258 = vpack.c.b16 %v248, %v247
    %v259 = vpack.c.b16 %v250, %v249
    %v260 = vpack.c.b16 %v252, %v251
    %269 = vmatprep.subr.bf16.mxu0 0
    %270 = vmatpush1.bf16.msra.mxu0 %v260
    %271 = vmatprep.subr.bf16.mxu0 0
    %272 = vmatpush1.bf16.msra.mxu0 %v259
    %273 = vmatprep.subr.bf16.mxu0 0
    %274 = vmatpush1.bf16.msra.mxu0 %v258
    %275 = vmatprep.subr.bf16.mxu0 0
    %276 = vmatpush1.bf16.msra.mxu0 %v257
    %277 = vmatprep.subr.bf16.mxu0 0
    %278 = vmatpush1.bf16.msra.mxu0 %v256
    %279 = vmatprep.subr.bf16.mxu0 0
    %280 = vmatpush1.bf16.msra.mxu0 %v255
    %281 = vmatprep.subr.bf16.mxu0 0
    %282 = vmatpush1.bf16.msra.mxu0 %v254
    %283 = vmatprep.subr.bf16.mxu0 0
    %284 = vmatpush1.bf16.msra.mxu0 %v253
    %285 = vmatprep.subr.bf16.mxu0 0
    %286 = vmatpush2.bf16.msra.mxu0 0
    %287 = vmatprep.subr.bf16.mxu0 0
    %288 = vmatpush2.bf16.msra.mxu0 0
    %289 = vmatprep.subr.bf16.mxu0 0
    %290 = vmatpush2.bf16.msra.mxu0 0
    %291 = vmatprep.subr.bf16.mxu0 0
    %292 = vmatpush2.bf16.msra.mxu0 0
    %293 = vmatprep.subr.bf16.mxu0 0
    %294 = vmatpush2.bf16.msra.mxu0 0
    %295 = vmatprep.subr.bf16.mxu0 0
    %296 = vmatpush2.bf16.msra.mxu0 0
    %297 = vmatprep.subr.bf16.mxu0 0
    %298 = vmatpush2.bf16.msra.mxu0 0
    %299 = vmatprep.subr.bf16.mxu0 0
    %300 = vmatpush2.bf16.msra.mxu0 0
    %301 = vmatprep.mubr.bf16.mxu0 0
    %302 = vmatmul.mubr.bf16.gmra.mxu0 %v132
    %v303 = vpop.f32.mrf.mxu0
    %v304 = vadd.f32 0.0, %v303
    %v305 = vpop.f32.mrf.mxu0
    %v306 = vpop.f32.mrf.mxu0
    %v307 = vpop.f32.mrf.mxu0
    %308 = vdwg.mxu0
    %309 = vxpose.xlu0.b32.start [1/16] %v304, 128
    %310 = vxpose.xlu0.b32.cont [2/16] 0.0, 128
    %311 = vxpose.xlu0.b32.cont [3/16] 0.0, 128
    %312 = vxpose.xlu0.b32.cont [4/16] 0.0, 128
    %313 = vxpose.xlu0.b32.cont [5/16] 0.0, 128
    %314 = vxpose.xlu0.b32.cont [6/16] 0.0, 128
    %315 = vxpose.xlu0.b32.cont [7/16] 0.0, 128
    %316 = vxpose.xlu0.b32.cont [8/16] 0.0, 128
    %317 = vxpose.xlu0.b32.cont [9/16] 0.0, 128
    %318 = vxpose.xlu0.b32.cont [10/16] 0.0, 128
    %319 = vxpose.xlu0.b32.cont [11/16] 0.0, 128
    %320 = vxpose.xlu0.b32.cont [12/16] 0.0, 128
    %321 = vxpose.xlu0.b32.cont [13/16] 0.0, 128
    %322 = vxpose.xlu0.b32.cont [14/16] 0.0, 128
    %323 = vxpose.xlu0.b32.cont [15/16] 0.0, 128
    %324 = vxpose.xlu0.b32.end [16/16] 0.0, 128
    %v325 = vpop.trf.xlu0
    %v326 = vpop.trf.xlu0
    %v327 = vpop.trf.xlu0
    %v328 = vpop.trf.xlu0
    %v329 = vpop.trf.xlu0
    %v330 = vpop.trf.xlu0
    %v331 = vpop.trf.xlu0
    %v332 = vpop.trf.xlu0
    %v333 = vpop.trf.xlu0
    %v334 = vpop.trf.xlu0
    %v335 = vpop.trf.xlu0
    %v336 = vpop.trf.xlu0
    %v337 = vpop.trf.xlu0
    %v338 = vpop.trf.xlu0
    %v339 = vpop.trf.xlu0
    %v340 = vpop.trf.xlu0
    %v341 = vpack.c.bf16 %v216, %v216
    %343 = vset.pattern.permute.xlu0 1
    %344 = vperm.xlu0 %343, %v304
    %v345 = vpop.permute.xlu0 %344
    %v347 = vlaneseq
    %v348 = vshrl.u32 %v347, 7
    %v349 = vsub.s32 0, %v348
    %v350 = vrot.slane %v325, %v349
    %v351 = vadd.f32 %v345, %v350
    %vm352 = vcmp.ge.f32.partialorder %v351, 0.0
    %v353 = vmul.f32 %v351, 0.2
    %v354 = vsel %vm352, %v351, %v353
    %v355 = vsel %vm44, 16843009, 0
    %v356 = vunpack.c.0.s8 %v355
    %vm357 = vcmp.ne.s32.totalorder %v356, 0
    %v358 = vsel %vm357, %v354, -1e+30
    %vm359 = vcmask 64512
    %v360 = vsel %vm359, %v358, -inf
    %361 = vmax.xlane.f32.xlu0 %v360
    %v362 = vpop.xlane.xlu0 %361
    %v363 = vsub.f32 %v358, %v362
    %v364 = vmul.f32 %v363, 1.442695
    %v365 = vpow.pop %v364
    %v366 = vsel %vm359, %v365, 0.0
    %367 = vadd.xlane.f32.xlu0 %v366
    %v368 = vpop.xlane.xlu0 %367
    %v369 = vrcp.pop %v368
    %v370 = vmul.f32 %v365, %v369
    %v371 = vpack.c.bf16 %v370, %v370
    %v372 = vlaneseq
    %v373 = vshrl.u32 %v372, 7
    %v374 = vsub.s32 0, %v373
    %v375 = vrot.slane %v129, %v374
    %v377 = vsel %vm359, %v371, 0
    %vm379 = vcmask 1043456
    %v381 = vsel %vm379, %v341, 0
    %383 = vmatprep.subr.bf16.mxu0 0
    %384 = vmatpush1.bf16.msra.mxu0 0
    %385 = vmatprep.subr.bf16.mxu0 0
    %386 = vmatpush1.bf16.msra.mxu0 0
    %387 = vmatprep.subr.bf16.mxu0 0
    %388 = vmatpush1.bf16.msra.mxu0 0
    %389 = vmatprep.subr.bf16.mxu0 0
    %390 = vmatpush1.bf16.msra.mxu0 0
    %391 = vmatprep.subr.bf16.mxu0 0
    %392 = vmatpush1.bf16.msra.mxu0 0
    %393 = vmatprep.subr.bf16.mxu0 0
    %394 = vmatpush1.bf16.msra.mxu0 0
    %395 = vmatprep.subr.bf16.mxu0 0
    %396 = vmatpush1.bf16.msra.mxu0 0
    %397 = vmatprep.subr.bf16.mxu0 0
    %398 = vmatpush1.bf16.msra.mxu0 %v381
    %399 = vmatprep.subr.bf16.mxu0 0
    %400 = vmatpush2.bf16.msra.mxu0 0
    %401 = vmatprep.subr.bf16.mxu0 0
    %402 = vmatpush2.bf16.msra.mxu0 0
    %403 = vmatprep.subr.bf16.mxu0 0
    %404 = vmatpush2.bf16.msra.mxu0 0
    %405 = vmatprep.subr.bf16.mxu0 0
    %406 = vmatpush2.bf16.msra.mxu0 0
    %407 = vmatprep.subr.bf16.mxu0 0
    %408 = vmatpush2.bf16.msra.mxu0 0
    %409 = vmatprep.subr.bf16.mxu0 0
    %410 = vmatpush2.bf16.msra.mxu0 0
    %411 = vmatprep.subr.bf16.mxu0 0
    %412 = vmatpush2.bf16.msra.mxu0 0
    %413 = vmatprep.subr.bf16.mxu0 0
    %414 = vmatpush2.bf16.msra.mxu0 0
    %415 = vmatprep.mubr.bf16.mxu0 0
    %416 = vmatmul.mubr.bf16.gmra.mxu0 %v377
    %v417 = vpop.f32.mrf.mxu0
    %v418 = vadd.f32 %v375, %v417
    %v419 = vpop.f32.mrf.mxu0
    %v420 = vpop.f32.mrf.mxu0
    %v421 = vpop.f32.mrf.mxu0
    %422 = vdwg.mxu0
    %vm423 = vcmp.ge.f32.partialorder %v418, 0.0
    %v424 = vmul.f32 %v418, 0.01
    %v425 = vsel %vm423, %v418, %v424
    %vm426 = vcmask 523264
    %v427 = vsel %vm426, %v425, 0.0
    %v428 = vrot.slane %v427, 4
    %v429 = vadd.f32 %v427, %v428
    %v430 = vrot.slane %v429, 2
    %v431 = vadd.f32 %v429, %v430
    %v432 = vrot.slane %v431, 1
    %v433 = vadd.f32 %v431, %v432
    %v434 = vrcp.pop 8.0
    %v435 = vmul.f32 %v433, %v434
    %v436 = vmul.f32 %v425, %v425
    %v437 = vsel %vm426, %v436, 0.0
    %v438 = vrot.slane %v437, 4
    %v439 = vadd.f32 %v437, %v438
    %v440 = vrot.slane %v439, 2
    %v441 = vadd.f32 %v439, %v440
    %v442 = vrot.slane %v441, 1
    %v443 = vadd.f32 %v441, %v442
    %v444 = vmul.f32 %v443, %v434
    %v445 = vmul.f32 %v435, %v435
    %v446 = vsub.f32 %v444, %v445
    %v447 = vsub.f32 %v425, %v435
    %v448 = vadd.f32 %v446, 1e-05
    %v449 = vrsqrt.pop %v448
    %v450 = vmul.f32 %v447, %v449
    %v451 = vlaneseq
    %v452 = vshrl.u32 %v451, 7
    %v453 = vsub.s32 1, %v452
    %v454 = vrot.slane %v129, %v453
    %v455 = vmul.f32 %v450, %v454
    %v456 = vlaneseq
    %v457 = vshrl.u32 %v456, 7
    %v458 = vsub.s32 2, %v457
    %v459 = vrot.slane %v129, %v458
    %v460 = vadd.f32 %v455, %v459
    %461 = vset.pattern.permute.xlu0 3
    %462 = vperm.xlu0 %461, %v304
    %v463 = vpop.permute.xlu0 %462
    %v465 = vlaneseq
    %v466 = vshrl.u32 %v465, 7
    %v467 = vsub.s32 2, %v466
    %v468 = vrot.slane %v325, %v467
    %v469 = vadd.f32 %v463, %v468
    %vm470 = vcmp.ge.f32.partialorder %v469, 0.0
    %v471 = vmul.f32 %v469, 0.2
    %v472 = vsel %vm470, %v469, %v471
    %v473 = vsel %vm357, %v472, -1e+30
    %v474 = vsel %vm359, %v473, -inf
    %475 = vmax.xlane.f32.xlu0 %v474
    %v476 = vpop.xlane.xlu0 %475
    %v477 = vsub.f32 %v473, %v476
    %v478 = vmul.f32 %v477, 1.442695
    %v479 = vpow.pop %v478
    %v480 = vsel %vm359, %v479, 0.0
    %481 = vadd.xlane.f32.xlu0 %v480
    %v482 = vpop.xlane.xlu0 %481
    %v483 = vrcp.pop %v482
    %v484 = vmul.f32 %v479, %v483
    %v485 = vpack.c.bf16 %v484, %v484
    %487 = vrot.lane.b32.xlu0 %v341, 64
    %v488 = vpop.permute.xlu0 %487
    %490 = vrot.lane.b32.xlu0 %v375, 64
    %v491 = vpop.permute.xlu0 %490
    %v494 = vsel %vm359, %v485, 0
    %v497 = vsel %vm379, %v488, 0
    %499 = vmatprep.subr.bf16.mxu0 0
    %500 = vmatpush1.bf16.msra.mxu0 0
    %501 = vmatprep.subr.bf16.mxu0 0
    %502 = vmatpush1.bf16.msra.mxu0 0
    %503 = vmatprep.subr.bf16.mxu0 0
    %504 = vmatpush1.bf16.msra.mxu0 0
    %505 = vmatprep.subr.bf16.mxu0 0
    %506 = vmatpush1.bf16.msra.mxu0 0
    %507 = vmatprep.subr.bf16.mxu0 0
    %508 = vmatpush1.bf16.msra.mxu0 0
    %509 = vmatprep.subr.bf16.mxu0 0
    %510 = vmatpush1.bf16.msra.mxu0 0
    %511 = vmatprep.subr.bf16.mxu0 0
    %512 = vmatpush1.bf16.msra.mxu0 0
    %513 = vmatprep.subr.bf16.mxu0 0
    %514 = vmatpush1.bf16.msra.mxu0 %v497
    %515 = vmatprep.subr.bf16.mxu0 0
    %516 = vmatpush2.bf16.msra.mxu0 0
    %517 = vmatprep.subr.bf16.mxu0 0
    %518 = vmatpush2.bf16.msra.mxu0 0
    %519 = vmatprep.subr.bf16.mxu0 0
    %520 = vmatpush2.bf16.msra.mxu0 0
    %521 = vmatprep.subr.bf16.mxu0 0
    %522 = vmatpush2.bf16.msra.mxu0 0
    %523 = vmatprep.subr.bf16.mxu0 0
    %524 = vmatpush2.bf16.msra.mxu0 0
    %525 = vmatprep.subr.bf16.mxu0 0
    %526 = vmatpush2.bf16.msra.mxu0 0
    %527 = vmatprep.subr.bf16.mxu0 0
    %528 = vmatpush2.bf16.msra.mxu0 0
    %529 = vmatprep.subr.bf16.mxu0 0
    %530 = vmatpush2.bf16.msra.mxu0 0
    %531 = vmatprep.mubr.bf16.mxu0 0
    %532 = vmatmul.mubr.bf16.gmra.mxu0 %v494
    %v533 = vpop.f32.mrf.mxu0
    %v534 = vadd.f32 %v491, %v533
    %v535 = vpop.f32.mrf.mxu0
    %v536 = vpop.f32.mrf.mxu0
    %v537 = vpop.f32.mrf.mxu0
    %538 = vdwg.mxu0
    %vm539 = vcmp.ge.f32.partialorder %v534, 0.0
    %v540 = vmul.f32 %v534, 0.01
    %v541 = vsel %vm539, %v534, %v540
    %v542 = vsel %vm426, %v541, 0.0
    %v543 = vrot.slane %v542, 4
    %v544 = vadd.f32 %v542, %v543
    %v545 = vrot.slane %v544, 2
    %v546 = vadd.f32 %v544, %v545
    %v547 = vrot.slane %v546, 1
    %v548 = vadd.f32 %v546, %v547
    %v549 = vmul.f32 %v548, %v434
    %v550 = vmul.f32 %v541, %v541
    %v551 = vsel %vm426, %v550, 0.0
    %v552 = vrot.slane %v551, 4
    %v553 = vadd.f32 %v551, %v552
    %v554 = vrot.slane %v553, 2
    %v555 = vadd.f32 %v553, %v554
    %v556 = vrot.slane %v555, 1
    %v557 = vadd.f32 %v555, %v556
    %v558 = vmul.f32 %v557, %v434
    %v559 = vmul.f32 %v549, %v549
    %v560 = vsub.f32 %v558, %v559
    %v561 = vsub.f32 %v541, %v549
    %v562 = vadd.f32 %v560, 1e-05
    %v563 = vrsqrt.pop %v562
    %v564 = vmul.f32 %v561, %v563
    %566 = vrot.lane.b32.xlu0 %v454, 64
    %v567 = vpop.permute.xlu0 %566
    %v569 = vmul.f32 %v564, %v567
    %571 = vrot.lane.b32.xlu0 %v459, 64
    %v572 = vpop.permute.xlu0 %571
    %v574 = vadd.f32 %v569, %v572
    %v575 = vpack.c.bf16 %v460, %v460
    %v576 = vpack.c.bf16 %v574, %v574
    %v585 = vunpack.c.l.b16 %v85
    %v586 = vunpack.c.l.b16 %v86
    %v587 = vunpack.c.l.b16 %v87
    %v588 = vunpack.c.l.b16 %v88
    %v589 = vunpack.c.l.b16 %v89
    %v590 = vunpack.c.l.b16 %v90
    %v591 = vunpack.c.l.b16 %v91
    %v592 = vunpack.c.l.b16 %v92
    %v593 = vpack.c.b16 %v586, %v585
    %v594 = vpack.c.b16 %v588, %v587
    %v595 = vpack.c.b16 %v590, %v589
    %v596 = vpack.c.b16 %v592, %v591
    %v602 = vsel %vm426, %v576, 0
    %604 = vmatprep.subr.bf16.mxu0 0
    %605 = vmatpush1.bf16.msra.mxu0 0
    %606 = vmatprep.subr.bf16.mxu0 0
    %607 = vmatpush1.bf16.msra.mxu0 0
    %608 = vmatprep.subr.bf16.mxu0 0
    %609 = vmatpush1.bf16.msra.mxu0 0
    %610 = vmatprep.subr.bf16.mxu0 0
    %611 = vmatpush1.bf16.msra.mxu0 0
    %612 = vmatprep.subr.bf16.mxu0 0
    %613 = vmatpush1.bf16.msra.mxu0 %v596
    %614 = vmatprep.subr.bf16.mxu0 0
    %615 = vmatpush1.bf16.msra.mxu0 %v595
    %616 = vmatprep.subr.bf16.mxu0 0
    %617 = vmatpush1.bf16.msra.mxu0 %v594
    %618 = vmatprep.subr.bf16.mxu0 0
    %619 = vmatpush1.bf16.msra.mxu0 %v593
    %620 = vmatprep.subr.bf16.mxu0 0
    %621 = vmatpush2.bf16.msra.mxu0 0
    %622 = vmatprep.subr.bf16.mxu0 0
    %623 = vmatpush2.bf16.msra.mxu0 0
    %624 = vmatprep.subr.bf16.mxu0 0
    %625 = vmatpush2.bf16.msra.mxu0 0
    %626 = vmatprep.subr.bf16.mxu0 0
    %627 = vmatpush2.bf16.msra.mxu0 0
    %628 = vmatprep.subr.bf16.mxu0 0
    %629 = vmatpush2.bf16.msra.mxu0 0
    %630 = vmatprep.subr.bf16.mxu0 0
    %631 = vmatpush2.bf16.msra.mxu0 0
    %632 = vmatprep.subr.bf16.mxu0 0
    %633 = vmatpush2.bf16.msra.mxu0 0
    %634 = vmatprep.subr.bf16.mxu0 0
    %635 = vmatpush2.bf16.msra.mxu0 0
    %636 = vmatprep.mubr.bf16.mxu0 0
    %637 = vmatmul.mubr.bf16.gmra.mxu0 %v602
    %v638 = vpop.f32.mrf.mxu0
    %v639 = vadd.f32 0.0, %v638
    %v640 = vpop.f32.mrf.mxu0
    %v641 = vpop.f32.mrf.mxu0
    %v642 = vpop.f32.mrf.mxu0
    %643 = vdwg.mxu0
    %v652 = vunpack.c.l.b16 %v77
    %v653 = vunpack.c.l.b16 %v78
    %v654 = vunpack.c.l.b16 %v79
    %v655 = vunpack.c.l.b16 %v80
    %v656 = vunpack.c.l.b16 %v81
    %v657 = vunpack.c.l.b16 %v82
    %v658 = vunpack.c.l.b16 %v83
    %v659 = vunpack.c.l.b16 %v84
    %v660 = vpack.c.b16 %v653, %v652
    %v661 = vpack.c.b16 %v655, %v654
    %v662 = vpack.c.b16 %v657, %v656
    %v663 = vpack.c.b16 %v659, %v658
    %v669 = vsel %vm426, %v575, 0
    %671 = vmatprep.subr.bf16.mxu0 0
    %672 = vmatpush1.bf16.msra.mxu0 0
    %673 = vmatprep.subr.bf16.mxu0 0
    %674 = vmatpush1.bf16.msra.mxu0 0
    %675 = vmatprep.subr.bf16.mxu0 0
    %676 = vmatpush1.bf16.msra.mxu0 0
    %677 = vmatprep.subr.bf16.mxu0 0
    %678 = vmatpush1.bf16.msra.mxu0 0
    %679 = vmatprep.subr.bf16.mxu0 0
    %680 = vmatpush1.bf16.msra.mxu0 %v663
    %681 = vmatprep.subr.bf16.mxu0 0
    %682 = vmatpush1.bf16.msra.mxu0 %v662
    %683 = vmatprep.subr.bf16.mxu0 0
    %684 = vmatpush1.bf16.msra.mxu0 %v661
    %685 = vmatprep.subr.bf16.mxu0 0
    %686 = vmatpush1.bf16.msra.mxu0 %v660
    %687 = vmatprep.subr.bf16.mxu0 0
    %688 = vmatpush2.bf16.msra.mxu0 0
    %689 = vmatprep.subr.bf16.mxu0 0
    %690 = vmatpush2.bf16.msra.mxu0 0
    %691 = vmatprep.subr.bf16.mxu0 0
    %692 = vmatpush2.bf16.msra.mxu0 0
    %693 = vmatprep.subr.bf16.mxu0 0
    %694 = vmatpush2.bf16.msra.mxu0 0
    %695 = vmatprep.subr.bf16.mxu0 0
    %696 = vmatpush2.bf16.msra.mxu0 0
    %697 = vmatprep.subr.bf16.mxu0 0
    %698 = vmatpush2.bf16.msra.mxu0 0
    %699 = vmatprep.subr.bf16.mxu0 0
    %700 = vmatpush2.bf16.msra.mxu0 0
    %701 = vmatprep.subr.bf16.mxu0 0
    %702 = vmatpush2.bf16.msra.mxu0 0
    %703 = vmatprep.mubr.bf16.mxu0 0
    %704 = vmatmul.mubr.bf16.gmra.mxu0 %v669
    %v705 = vpop.f32.mrf.mxu0
    %v706 = vadd.f32 %v639, %v705
    %v707 = vpop.f32.mrf.mxu0
    %v708 = vpop.f32.mrf.mxu0
    %v709 = vpop.f32.mrf.mxu0
    %710 = vdwg.mxu0
    %712 = vrot.lane.b32.xlu0 %v706, 64
    %v713 = vpop.permute.xlu0 %712
    %715 = vxpose.xlu0.b32.start [1/16] %v713, 128
    %716 = vxpose.xlu0.b32.cont [2/16] 0.0, 128
    %717 = vxpose.xlu0.b32.cont [3/16] 0.0, 128
    %718 = vxpose.xlu0.b32.cont [4/16] 0.0, 128
    %719 = vxpose.xlu0.b32.cont [5/16] 0.0, 128
    %720 = vxpose.xlu0.b32.cont [6/16] 0.0, 128
    %721 = vxpose.xlu0.b32.cont [7/16] 0.0, 128
    %722 = vxpose.xlu0.b32.cont [8/16] 0.0, 128
    %723 = vxpose.xlu0.b32.cont [9/16] 0.0, 128
    %724 = vxpose.xlu0.b32.cont [10/16] 0.0, 128
    %725 = vxpose.xlu0.b32.cont [11/16] 0.0, 128
    %726 = vxpose.xlu0.b32.cont [12/16] 0.0, 128
    %727 = vxpose.xlu0.b32.cont [13/16] 0.0, 128
    %728 = vxpose.xlu0.b32.cont [14/16] 0.0, 128
    %729 = vxpose.xlu0.b32.cont [15/16] 0.0, 128
    %730 = vxpose.xlu0.b32.end [16/16] 0.0, 128
    %v731 = vpop.trf.xlu0
    %v732 = vpop.trf.xlu0
    %v733 = vpop.trf.xlu0
    %v734 = vpop.trf.xlu0
    %v735 = vpop.trf.xlu0
    %v736 = vpop.trf.xlu0
    %v737 = vpop.trf.xlu0
    %v738 = vpop.trf.xlu0
    %v739 = vpop.trf.xlu0
    %v740 = vpop.trf.xlu0
    %v741 = vpop.trf.xlu0
    %v742 = vpop.trf.xlu0
    %v743 = vpop.trf.xlu0
    %v744 = vpop.trf.xlu0
    %v745 = vpop.trf.xlu0
    %v746 = vpop.trf.xlu0
    %v747 = vpack.c.bf16 %v706, %v706
    %748 = vset.pattern.permute.xlu0 65
    %749 = vperm.xlu0 %748, %v706
    %v750 = vpop.permute.xlu0 %749
    %v752 = vlaneseq
    %v753 = vshrl.u32 %v752, 7
    %v754 = vsub.s32 0, %v753
    %v755 = vrot.slane %v731, %v754
    %v756 = vadd.f32 %v750, %v755
    %vm757 = vcmp.ge.f32.partialorder %v756, 0.0
    %v758 = vmul.f32 %v756, 0.2
    %v759 = vsel %vm757, %v756, %v758
    %v760 = vsel %vm357, %v759, -1e+30
    %v761 = vsel %vm359, %v760, -inf
    %762 = vmax.xlane.f32.xlu0 %v761
    %v763 = vpop.xlane.xlu0 %762
    %v764 = vsub.f32 %v760, %v763
    %v765 = vmul.f32 %v764, 1.442695
    %v766 = vpow.pop %v765
    %v767 = vsel %vm359, %v766, 0.0
    %768 = vadd.xlane.f32.xlu0 %v767
    %v769 = vpop.xlane.xlu0 %768
    %v770 = vrcp.pop %v769
    %v771 = vmul.f32 %v766, %v770
    %v772 = vpack.c.bf16 %v771, %v771
    %v773 = vlaneseq
    %v774 = vshrl.u32 %v773, 7
    %v775 = vsub.s32 3, %v774
    %v776 = vrot.slane %v129, %v775
    %v778 = vsel %vm359, %v772, 0
    %v781 = vsel %vm379, %v747, 0
    %783 = vmatprep.subr.bf16.mxu0 0
    %784 = vmatpush1.bf16.msra.mxu0 0
    %785 = vmatprep.subr.bf16.mxu0 0
    %786 = vmatpush1.bf16.msra.mxu0 0
    %787 = vmatprep.subr.bf16.mxu0 0
    %788 = vmatpush1.bf16.msra.mxu0 0
    %789 = vmatprep.subr.bf16.mxu0 0
    %790 = vmatpush1.bf16.msra.mxu0 0
    %791 = vmatprep.subr.bf16.mxu0 0
    %792 = vmatpush1.bf16.msra.mxu0 0
    %793 = vmatprep.subr.bf16.mxu0 0
    %794 = vmatpush1.bf16.msra.mxu0 0
    %795 = vmatprep.subr.bf16.mxu0 0
    %796 = vmatpush1.bf16.msra.mxu0 0
    %797 = vmatprep.subr.bf16.mxu0 0
    %798 = vmatpush1.bf16.msra.mxu0 %v781
    %799 = vmatprep.subr.bf16.mxu0 0
    %800 = vmatpush2.bf16.msra.mxu0 0
    %801 = vmatprep.subr.bf16.mxu0 0
    %802 = vmatpush2.bf16.msra.mxu0 0
    %803 = vmatprep.subr.bf16.mxu0 0
    %804 = vmatpush2.bf16.msra.mxu0 0
    %805 = vmatprep.subr.bf16.mxu0 0
    %806 = vmatpush2.bf16.msra.mxu0 0
    %807 = vmatprep.subr.bf16.mxu0 0
    %808 = vmatpush2.bf16.msra.mxu0 0
    %809 = vmatprep.subr.bf16.mxu0 0
    %810 = vmatpush2.bf16.msra.mxu0 0
    %811 = vmatprep.subr.bf16.mxu0 0
    %812 = vmatpush2.bf16.msra.mxu0 0
    %813 = vmatprep.subr.bf16.mxu0 0
    %814 = vmatpush2.bf16.msra.mxu0 0
    %815 = vmatprep.mubr.bf16.mxu0 0
    %816 = vmatmul.mubr.bf16.gmra.mxu0 %v778
    %v817 = vpop.f32.mrf.mxu0
    %v818 = vadd.f32 %v776, %v817
    %v819 = vpop.f32.mrf.mxu0
    %v820 = vpop.f32.mrf.mxu0
    %v821 = vpop.f32.mrf.mxu0
    %822 = vdwg.mxu0
    %vm823 = vcmp.ge.f32.partialorder %v818, 0.0
    %v824 = vmul.f32 %v818, 0.01
    %v825 = vsel %vm823, %v818, %v824
    %v826 = vsel %vm426, %v825, 0.0
    %v827 = vrot.slane %v826, 4
    %v828 = vadd.f32 %v826, %v827
    %v829 = vrot.slane %v828, 2
    %v830 = vadd.f32 %v828, %v829
    %v831 = vrot.slane %v830, 1
    %v832 = vadd.f32 %v830, %v831
    %v833 = vmul.f32 %v832, %v434
    %v834 = vmul.f32 %v825, %v825
    %v835 = vsel %vm426, %v834, 0.0
    %v836 = vrot.slane %v835, 4
    %v837 = vadd.f32 %v835, %v836
    %v838 = vrot.slane %v837, 2
    %v839 = vadd.f32 %v837, %v838
    %v840 = vrot.slane %v839, 1
    %v841 = vadd.f32 %v839, %v840
    %v842 = vmul.f32 %v841, %v434
    %v843 = vmul.f32 %v833, %v833
    %v844 = vsub.f32 %v842, %v843
    %v845 = vsub.f32 %v825, %v833
    %v846 = vadd.f32 %v844, 1e-05
    %v847 = vrsqrt.pop %v846
    %v848 = vmul.f32 %v845, %v847
    %v849 = vlaneseq
    %v850 = vshrl.u32 %v849, 7
    %v851 = vsub.s32 4, %v850
    %v852 = vrot.slane %v129, %v851
    %v853 = vmul.f32 %v848, %v852
    %v854 = vlaneseq
    %v855 = vshrl.u32 %v854, 7
    %v856 = vsub.s32 5, %v855
    %v857 = vrot.slane %v129, %v856
    %v858 = vadd.f32 %v853, %v857
    %859 = vst.msk [vmem:[#allocation2] sm:$0xff] %vm426, %v858
    %s860 = sld [smem:[#allocation3]]
    %s861 = scalar_lea.vmem [#allocation2], %s860
    %v862 = vld [vmem:[%s861] sm:$0x1]
    %s863 = sld [smem:[#allocation3 + $0x1]]
    %s864 = scalar_lea.vmem [#allocation2], %s863
    %v865 = vld [vmem:[%s864] sm:$0x1]
    %s866 = sld [smem:[#allocation3 + $0x2]]
    %s867 = scalar_lea.vmem [#allocation2], %s866
    %v868 = vld [vmem:[%s867] sm:$0x1]
    %s869 = sld [smem:[#allocation3 + $0x3]]
    %s870 = scalar_lea.vmem [#allocation2], %s869
    %v871 = vld [vmem:[%s870] sm:$0x1]
    %v873 = vrot.slane %v865, 7
    %v876 = vrot.slane %v868, 6
    %v879 = vrot.slane %v871, 5
    %vm881 = vcmask 1040384
    %v882 = vsel %vm881, %v862, %v873
    %vm883 = vcmask 1041408
    %v884 = vsel %vm883, %v882, %v876
    %vm885 = vcmask 1042432
    %v886 = vsel %vm885, %v884, %v879
    %v887 = vpack.c.bf16 %v886, %v886
    %v888 = vld [vmem:[%s3] sm:$0xf]
    %v889 = vpack.c.bf16 %v888, %v888
    %v906 = vunpack.c.l.b16 %v101
    %v907 = vunpack.c.l.b16 %v102
    %v908 = vunpack.c.l.b16 %v103
    %v909 = vunpack.c.l.b16 %v104
    %v910 = vunpack.c.l.b16 %v105
    %v911 = vunpack.c.l.b16 %v106
    %v912 = vunpack.c.l.b16 %v107
    %v913 = vunpack.c.l.b16 %v108
    %v914 = vunpack.c.l.b16 %v109
    %v915 = vunpack.c.l.b16 %v110
    %v916 = vunpack.c.l.b16 %v111
    %v917 = vunpack.c.l.b16 %v112
    %v918 = vunpack.c.l.b16 %v113
    %v919 = vunpack.c.l.b16 %v114
    %v920 = vunpack.c.l.b16 %v115
    %v921 = vunpack.c.l.b16 %v116
    %v922 = vpack.c.b16 %v907, %v906
    %v923 = vpack.c.b16 %v909, %v908
    %v924 = vpack.c.b16 %v911, %v910
    %v925 = vpack.c.b16 %v913, %v912
    %v926 = vpack.c.b16 %v915, %v914
    %v927 = vpack.c.b16 %v917, %v916
    %v928 = vpack.c.b16 %v919, %v918
    %v929 = vpack.c.b16 %v921, %v920
    %938 = vmatprep.subr.bf16.mxu0 0
    %939 = vmatpush1.bf16.msra.mxu0 %v929
    %940 = vmatprep.subr.bf16.mxu0 0
    %941 = vmatpush1.bf16.msra.mxu0 %v928
    %942 = vmatprep.subr.bf16.mxu0 0
    %943 = vmatpush1.bf16.msra.mxu0 %v927
    %944 = vmatprep.subr.bf16.mxu0 0
    %945 = vmatpush1.bf16.msra.mxu0 %v926
    %946 = vmatprep.subr.bf16.mxu0 0
    %947 = vmatpush1.bf16.msra.mxu0 %v925
    %948 = vmatprep.subr.bf16.mxu0 0
    %949 = vmatpush1.bf16.msra.mxu0 %v924
    %950 = vmatprep.subr.bf16.mxu0 0
    %951 = vmatpush1.bf16.msra.mxu0 %v923
    %952 = vmatprep.subr.bf16.mxu0 0
    %953 = vmatpush1.bf16.msra.mxu0 %v922
    %954 = vmatprep.subr.bf16.mxu0 0
    %955 = vmatpush2.bf16.msra.mxu0 0
    %956 = vmatprep.subr.bf16.mxu0 0
    %957 = vmatpush2.bf16.msra.mxu0 0
    %958 = vmatprep.subr.bf16.mxu0 0
    %959 = vmatpush2.bf16.msra.mxu0 0
    %960 = vmatprep.subr.bf16.mxu0 0
    %961 = vmatpush2.bf16.msra.mxu0 0
    %962 = vmatprep.subr.bf16.mxu0 0
    %963 = vmatpush2.bf16.msra.mxu0 0
    %964 = vmatprep.subr.bf16.mxu0 0
    %965 = vmatpush2.bf16.msra.mxu0 0
    %966 = vmatprep.subr.bf16.mxu0 0
    %967 = vmatpush2.bf16.msra.mxu0 0
    %968 = vmatprep.subr.bf16.mxu0 0
    %969 = vmatpush2.bf16.msra.mxu0 0
    %970 = vmatprep.mubr.bf16.mxu0 0
    %971 = vmatmul.mubr.bf16.gmra.mxu0 %v889
    %v972 = vpop.f32.mrf.mxu0
    %v973 = vadd.f32 0.0, %v972
    %v974 = vpop.f32.mrf.mxu0
    %v975 = vpop.f32.mrf.mxu0
    %v976 = vpop.f32.mrf.mxu0
    %977 = vdwg.mxu0
    %v986 = vunpack.c.l.b16 %v93
    %v987 = vunpack.c.l.b16 %v94
    %v988 = vunpack.c.l.b16 %v95
    %v989 = vunpack.c.l.b16 %v96
    %v990 = vunpack.c.l.b16 %v97
    %v991 = vunpack.c.l.b16 %v98
    %v992 = vunpack.c.l.b16 %v99
    %v993 = vunpack.c.l.b16 %v100
    %v994 = vpack.c.b16 %v987, %v986
    %v995 = vpack.c.b16 %v989, %v988
    %v996 = vpack.c.b16 %v991, %v990
    %v997 = vpack.c.b16 %v993, %v992
    %v1003 = vsel %vm426, %v887, 0
    %1005 = vmatprep.subr.bf16.mxu0 0
    %1006 = vmatpush1.bf16.msra.mxu0 0
    %1007 = vmatprep.subr.bf16.mxu0 0
    %1008 = vmatpush1.bf16.msra.mxu0 0
    %1009 = vmatprep.subr.bf16.mxu0 0
    %1010 = vmatpush1.bf16.msra.mxu0 0
    %1011 = vmatprep.subr.bf16.mxu0 0
    %1012 = vmatpush1.bf16.msra.mxu0 0
    %1013 = vmatprep.subr.bf16.mxu0 0
    %1014 = vmatpush1.bf16.msra.mxu0 %v997
    %1015 = vmatprep.subr.bf16.mxu0 0
    %1016 = vmatpush1.bf16.msra.mxu0 %v996
    %1017 = vmatprep.subr.bf16.mxu0 0
    %1018 = vmatpush1.bf16.msra.mxu0 %v995
    %1019 = vmatprep.subr.bf16.mxu0 0
    %1020 = vmatpush1.bf16.msra.mxu0 %v994
    %1021 = vmatprep.subr.bf16.mxu0 0
    %1022 = vmatpush2.bf16.msra.mxu0 0
    %1023 = vmatprep.subr.bf16.mxu0 0
    %1024 = vmatpush2.bf16.msra.mxu0 0
    %1025 = vmatprep.subr.bf16.mxu0 0
    %1026 = vmatpush2.bf16.msra.mxu0 0
    %1027 = vmatprep.subr.bf16.mxu0 0
    %1028 = vmatpush2.bf16.msra.mxu0 0
    %1029 = vmatprep.subr.bf16.mxu0 0
    %1030 = vmatpush2.bf16.msra.mxu0 0
    %1031 = vmatprep.subr.bf16.mxu0 0
    %1032 = vmatpush2.bf16.msra.mxu0 0
    %1033 = vmatprep.subr.bf16.mxu0 0
    %1034 = vmatpush2.bf16.msra.mxu0 0
    %1035 = vmatprep.subr.bf16.mxu0 0
    %1036 = vmatpush2.bf16.msra.mxu0 0
    %1037 = vmatprep.mubr.bf16.mxu0 0
    %1038 = vmatmul.mubr.bf16.gmra.mxu0 %v1003
    %v1039 = vpop.f32.mrf.mxu0
    %v1040 = vadd.f32 %v973, %v1039
    %v1041 = vpop.f32.mrf.mxu0
    %v1042 = vpop.f32.mrf.mxu0
    %v1043 = vpop.f32.mrf.mxu0
    %1044 = vdwg.mxu0
    %v1045 = vlaneseq
    %v1046 = vshrl.u32 %v1045, 7
    %v1047 = vsub.s32 6, %v1046
    %v1048 = vrot.slane %v129, %v1047
    %v1049 = vadd.f32 %v1040, %v1048
    %vm1050 = vcmp.ge.f32.partialorder %v1049, 0.0
    %v1051 = vmul.f32 %v1049, 0.01
    %v1052 = vsel %vm1050, %v1049, %v1051
    %v1053 = vpack.c.bf16 %v1052, %v1052
    %v1054 = vlaneseq
    %v1055 = vshrl.u32 %v1054, 7
    %v1056 = vsub.s32 7, %v1055
    %v1057 = vrot.slane %v129, %v1056
    %v1066 = vunpack.c.l.b16 %v117
    %v1067 = vunpack.c.l.b16 %v118
    %v1068 = vunpack.c.l.b16 %v119
    %v1069 = vunpack.c.l.b16 %v120
    %v1070 = vunpack.c.l.b16 %v121
    %v1071 = vunpack.c.l.b16 %v122
    %v1072 = vunpack.c.l.b16 %v123
    %v1073 = vunpack.c.l.b16 %v124
    %v1074 = vpack.c.b16 %v1067, %v1066
    %v1075 = vpack.c.b16 %v1069, %v1068
    %v1076 = vpack.c.b16 %v1071, %v1070
    %v1077 = vpack.c.b16 %v1073, %v1072
    %v1083 = vsel %vm426, %v1053, 0
    %1085 = vmatprep.subr.bf16.mxu0 0
    %1086 = vmatpush1.bf16.msra.mxu0 0
    %1087 = vmatprep.subr.bf16.mxu0 0
    %1088 = vmatpush1.bf16.msra.mxu0 0
    %1089 = vmatprep.subr.bf16.mxu0 0
    %1090 = vmatpush1.bf16.msra.mxu0 0
    %1091 = vmatprep.subr.bf16.mxu0 0
    %1092 = vmatpush1.bf16.msra.mxu0 0
    %1093 = vmatprep.subr.bf16.mxu0 0
    %1094 = vmatpush1.bf16.msra.mxu0 %v1077
    %1095 = vmatprep.subr.bf16.mxu0 0
    %1096 = vmatpush1.bf16.msra.mxu0 %v1076
    %1097 = vmatprep.subr.bf16.mxu0 0
    %1098 = vmatpush1.bf16.msra.mxu0 %v1075
    %1099 = vmatprep.subr.bf16.mxu0 0
    %1100 = vmatpush1.bf16.msra.mxu0 %v1074
    %1101 = vmatprep.subr.bf16.mxu0 0
    %1102 = vmatpush2.bf16.msra.mxu0 0
    %1103 = vmatprep.subr.bf16.mxu0 0
    %1104 = vmatpush2.bf16.msra.mxu0 0
    %1105 = vmatprep.subr.bf16.mxu0 0
    %1106 = vmatpush2.bf16.msra.mxu0 0
    %1107 = vmatprep.subr.bf16.mxu0 0
    %1108 = vmatpush2.bf16.msra.mxu0 0
    %1109 = vmatprep.subr.bf16.mxu0 0
    %1110 = vmatpush2.bf16.msra.mxu0 0
    %1111 = vmatprep.subr.bf16.mxu0 0
    %1112 = vmatpush2.bf16.msra.mxu0 0
    %1113 = vmatprep.subr.bf16.mxu0 0
    %1114 = vmatpush2.bf16.msra.mxu0 0
    %1115 = vmatprep.subr.bf16.mxu0 0
    %1116 = vmatpush2.bf16.msra.mxu0 0
    %1117 = vmatprep.mubr.bf16.mxu0 0
    %1118 = vmatmul.mubr.bf16.gmra.mxu0 %v1083
    %v1119 = vpop.f32.mrf.mxu0
    %v1120 = vadd.f32 %v1057, %v1119
    %v1121 = vpop.f32.mrf.mxu0
    %v1122 = vpop.f32.mrf.mxu0
    %v1123 = vpop.f32.mrf.mxu0
    %1124 = vdwg.mxu0
    %vm1125 = vcmp.ge.f32.partialorder %v1120, 0.0
    %v1126 = vmul.f32 %v1120, 0.01
    %v1127 = vsel %vm1125, %v1120, %v1126
    %v1128 = vpack.c.bf16 %v1127, %v1127
    %v1129 = vlaneseq
    %v1130 = vshrl.u32 %v1129, 7
    %v1131 = vsub.s32 0, %v1130
    %v1132 = vrot.slane %v130, %v1131
    %v1137 = vunpack.c.l.b16 %v125
    %v1138 = vunpack.c.l.b16 %v126
    %v1139 = vunpack.c.l.b16 %v127
    %v1140 = vunpack.c.l.b16 %v128
    %v1141 = vpack.c.b16 %v1138, %v1137
    %v1142 = vpack.c.b16 %v1140, %v1139
    %vm1145 = vcmask 261120
    %v1147 = vsel %vm1145, %v1128, 0
    %1149 = vmatprep.subr.bf16.mxu0 0
    %1150 = vmatpush1.bf16.msra.mxu0 0
    %1151 = vmatprep.subr.bf16.mxu0 0
    %1152 = vmatpush1.bf16.msra.mxu0 0
    %1153 = vmatprep.subr.bf16.mxu0 0
    %1154 = vmatpush1.bf16.msra.mxu0 0
    %1155 = vmatprep.subr.bf16.mxu0 0
    %1156 = vmatpush1.bf16.msra.mxu0 0
    %1157 = vmatprep.subr.bf16.mxu0 0
    %1158 = vmatpush1.bf16.msra.mxu0 0
    %1159 = vmatprep.subr.bf16.mxu0 0
    %1160 = vmatpush1.bf16.msra.mxu0 0
    %1161 = vmatprep.subr.bf16.mxu0 0
    %1162 = vmatpush1.bf16.msra.mxu0 %v1142
    %1163 = vmatprep.subr.bf16.mxu0 0
    %1164 = vmatpush1.bf16.msra.mxu0 %v1141
    %1165 = vmatprep.subr.bf16.mxu0 0
    %1166 = vmatpush2.bf16.msra.mxu0 0
    %1167 = vmatprep.subr.bf16.mxu0 0
    %1168 = vmatpush2.bf16.msra.mxu0 0
    %1169 = vmatprep.subr.bf16.mxu0 0
    %1170 = vmatpush2.bf16.msra.mxu0 0
    %1171 = vmatprep.subr.bf16.mxu0 0
    %1172 = vmatpush2.bf16.msra.mxu0 0
    %1173 = vmatprep.subr.bf16.mxu0 0
    %1174 = vmatpush2.bf16.msra.mxu0 0
    %1175 = vmatprep.subr.bf16.mxu0 0
    %1176 = vmatpush2.bf16.msra.mxu0 0
    %1177 = vmatprep.subr.bf16.mxu0 0
    %1178 = vmatpush2.bf16.msra.mxu0 0
    %1179 = vmatprep.subr.bf16.mxu0 0
    %1180 = vmatpush2.bf16.msra.mxu0 0
    %1181 = vmatprep.mubr.bf16.mxu0 0
    %1182 = vmatmul.mubr.bf16.gmra.mxu0 %v1147
    %v1183 = vpop.f32.mrf.mxu0
    %v1184 = vadd.f32 %v1132, %v1183
    %v1185 = vpop.f32.mrf.mxu0
    %v1186 = vpop.f32.mrf.mxu0
    %v1187 = vpop.f32.mrf.mxu0
    %1188 = vdwg.mxu0
    %1189 = vst [vmem:[#allocation6] sm:$0xf] %v1184
    %v1190 = vand.u32 2147483647, %v1184
    %v1191 = vsub.f32 0.0, %v1190
    %v1192 = vmul.f32 %v1191, 1.442695
    %v1193 = vpow.pop %v1192
    %v1194 = vadd.f32 %v1193, 1.0
    %vm1195 = vcmp.ge.f32.partialorder %v1184, 0.0
    %v1196 = vrcp.pop %v1194
    %v1197 = vmul.f32 1.0, %v1196
    %v1198 = vmul.f32 %v1193, %v1196
    %v1199 = vsel %vm1195, %v1197, %v1198
    %1200 = vst [vmem:[#allocation7] sm:$0xf] %v1199
    // Predicated region
    $region30: #{forward.1} parent=1 // pred_check
      _
    $region31: #{forward.1} parent=1 // pred_check_branch
      %1202 = sbr.rel (0) target = $region33
    $region32: #{forward.1} parent=1 // pred_region
      %s1204 = ssub.s32 64, 64
      %1205 = vsyncadd [#allocation4], %s1204
      %s1207 = sshll.u32 [#allocation6], 4
      %s1208 = int_to_ptr.vmem [resolvable:$true] %s1207
      %1210 = dma.vmem_to_hbm [thread:$0]  %s1208, 64, %s6, [#allocation4]
    $region33: #{forward.1} parent=1 // pred_fallthru
      _
    // Predicated region
    $region34: #{forward.1} parent=1 // pred_check
      _
    $region35: #{forward.1} parent=1 // pred_check_branch
      %1212 = sbr.rel (0) target = $region37
    $region36: #{forward.1} parent=1 // pred_region
      %s1214 = ssub.s32 64, 64
      %1215 = vsyncadd [#allocation8], %s1214
      %s1217 = sshll.u32 [#allocation7], 4
      %s1218 = int_to_ptr.vmem [resolvable:$true] %s1217
      %1220 = dma.vmem_to_hbm [thread:$0]  %s1218, 64, %s7, [#allocation8]
    $region37: #{forward.1} parent=1 // pred_fallthru
      _
    // Predicated region
    $region38: #{forward.1} parent=1 // pred_check
      _
    $region39: #{forward.1} parent=1 // pred_check_branch
      %1222 = sbr.rel (0) target = $region41
    $region40: #{forward.1} parent=1 // pred_region
      %1223 = dma.done [#allocation4], 64
    $region41: #{forward.1} parent=1 // pred_fallthru
      _
    // Predicated region
    $region42: #{forward.1} parent=1 // pred_check
      _
    $region43: #{forward.1} parent=1 // pred_check_branch
      %1225 = sbr.rel (0) target = $region45
    $region44: #{forward.1} parent=1 // pred_region
      %1226 = dma.done [#allocation8], 64
    $region45: #{forward.1} parent=1 // pred_fallthru
      _
    %1227 = vsyncpa [#allocation4], 1
    %1228 = vsyncpa [#allocation8], 1
    %1229 = vsyncpa [#allocation5], 1

</llo_original>
